<compile_context>
chip_gen: v7x
topology: tpu7x:2x2x1
jax: 0.10.0
libtpu: 0.0.40
codegen_flags: <defaults>
</compile_context>

<pallas_src>
import functools

import jax
import jax.numpy as jnp
from jax.experimental import pallas as pl
from jax.experimental.pallas import tpu as pltpu


def _round_up(x: int, m: int) -> int:
    return ((x + m - 1) // m) * m


def _cdiv(a: int, b: int) -> int:
    return (a + b - 1) // b


def _vmem_capacity_bytes() -> int:
    try:
        return int(pltpu.get_tpu_info().vmem_capacity_bytes)
    except Exception:
        return 64 * 1024 * 1024  # conservative fallback (v7x per-TC VMEM)


def _resident_spec(shape):
    """Constant-index (resident) BlockSpec, single-buffered when supported."""
    try:
        return pl.BlockSpec(shape, lambda i: (0, 0), pipeline_mode=pl.Buffered(1))
    except TypeError:  # older jax without pipeline_mode kwarg
        return pl.BlockSpec(shape, lambda i: (0, 0))


# ---------------------------------------------------------------------------
# Fully fused  [Linear -> activation -> LayerNorm] x (layer_N + 1)  kernel
# ---------------------------------------------------------------------------
def _mlp_fused_kernel(*refs, num_layers: int, hidden_true: int,
                      n_pad_lanes: int, use_relu: bool, eps: float):
    # refs = (x_ref, w0, b0, g0, bt0, w1, b1, g1, bt1, ..., o_ref)
    x_ref = refs[0]
    o_ref = refs[-1]
    p = refs[1:-1]

    h = x_ref[...]                                  # (TB, in_pad) f32
    inv_n = 1.0 / float(hidden_true)
    n_pad = float(n_pad_lanes)

    for l in range(num_layers):                     # static Python unroll
        w_ref, b_ref, g_ref, bt_ref = p[4 * l: 4 * l + 4]

        # Weights may already be bf16 (cast once in the wrapper); only the
        # activation needs a per-step cast in that mode.  f32 accumulation.
        lhs = h.astype(w_ref.dtype) if h.dtype != w_ref.dtype else h
        z = jnp.dot(lhs, w_ref[...], preferred_element_type=jnp.float32)
        z = z + b_ref[...]                          # bias (1, hid_pad) broadcasts

        if use_relu:
            z = jnp.maximum(z, 0.0)
        else:
            z = jnp.tanh(z)

        # LayerNorm over the TRUE feature count.  Padded lanes of z are
        # exactly zero (zero-padded weight columns / bias, relu(0)=tanh(0)=0),
        # so sum(z) over the full padded width equals the true sum.
        mean = jnp.sum(z, axis=-1, keepdims=True) * inv_n
        d = z - mean
        # Two-pass variance; each padded lane contributes (-mean)^2 to the
        # full-width sum of squares -> subtract n_pad * mean^2 analytically.
        ss = jnp.sum(d * d, axis=-1, keepdims=True) - n_pad * (mean * mean)
        var = jnp.maximum(ss * inv_n, 0.0)
        h = d * jax.lax.rsqrt(var + eps) * g_ref[...] + bt_ref[...]
        # gamma/beta are zero in padded lanes -> padded lanes of h stay 0.

    o_ref[...] = h.astype(o_ref.dtype)


# ---------------------------------------------------------------------------
# One-time parameter preparation (pad to lane-dense widths, optional bf16)
# ---------------------------------------------------------------------------
def prepare_mlp_params(params, input_dim, *, use_bf16_matmul=False):
    """Pad params to multiples of 128 lanes once; optionally cast weights to bf16.

    NOTE: padded columns of w / b / gamma / beta MUST remain zero so the
    padded activation lanes stay exactly zero through every layer.
    """
    hidden = params[0][0].shape[1]
    in_pad = _round_up(input_dim, 128)
    hid_pad = _round_up(hidden, 128)
    w_dtype = jnp.bfloat16 if use_bf16_matmul else jnp.float32

    layers = []
    for idx, (w, b, g, bt) in enumerate(params):
        d_in, d_out = w.shape
        d_in_p = in_pad if idx == 0 else hid_pad
        w_p = jnp.pad(w.astype(jnp.float32),
                      ((0, d_in_p - d_in), (0, hid_pad - d_out))).astype(w_dtype)
        b_p = jnp.pad(b.astype(jnp.float32).reshape(1, -1),
                      ((0, 0), (0, hid_pad - d_out)))
        g_p = jnp.pad(g.astype(jnp.float32).reshape(1, -1),
                      ((0, 0), (0, hid_pad - d_out)))
        bt_p = jnp.pad(bt.astype(jnp.float32).reshape(1, -1),
                       ((0, 0), (0, hid_pad - d_out)))
        layers.append((w_p, b_p, g_p, bt_p))

    return {
        "layers": layers,
        "input_dim": input_dim,
        "hidden": hidden,
        "in_pad": in_pad,
        "hid_pad": hid_pad,
    }


# ---------------------------------------------------------------------------
# Forward wrapper (one fused pallas_call for all layers)
# ---------------------------------------------------------------------------
def mlp_layer_forward(x, prepared, *, use_relu=True, eps=1e-5,
                      block_batch=None, out_dtype=jnp.float32):
    batch, input_dim = x.shape
    assert input_dim == prepared["input_dim"]
    hidden = prepared["hidden"]
    in_pad = prepared["in_pad"]
    hid_pad = prepared["hid_pad"]
    layers = prepared["layers"]
    num_layers = len(layers)

    out_bytes = jnp.dtype(out_dtype).itemsize
    param_bytes = sum(int(a.size) * a.dtype.itemsize
                      for layer in layers for a in layer)

    vmem_budget = int(0.85 * _vmem_capacity_bytes())

    def footprint(tb_):
        act = 2 * tb_ * in_pad * 4 + 2 * tb_ * hid_pad * out_bytes  # dbl-buffered io
        live = 3 * tb_ * hid_pad * 4                                # intermediates
        return param_bytes + act + live

    # ---- batch tiling policy ----------------------------------------------
    target_tb = 1024 if block_batch is None else max(8, int(block_batch))
    n_blocks = max(1, _cdiv(batch, target_tb))
    # Keep >= 2 grid steps so v7x's two TensorCores both get work; the extra
    # ~0.35us/step on single-core chips is negligible.
    if n_blocks == 1 and batch >= 16:
        n_blocks = 2
    tb = _round_up(_cdiv(batch, n_blocks), 8)
    while tb > 8 and footprint(tb) > vmem_budget:
        tb = _round_up(_cdiv(tb, 2), 8)
    n_blocks = _cdiv(batch, tb)
    batch_pad = n_blocks * tb

    # ---- pad activation (params are already padded/cast once) --------------
    x_p = jnp.pad(x.astype(jnp.float32),
                  ((0, batch_pad - batch), (0, in_pad - input_dim)))

    flat_inputs = [x_p]
    in_specs = [pl.BlockSpec((tb, in_pad), lambda i: (i, 0))]

    flops = 0
    transcendentals = 0
    bytes_accessed = x_p.size * 4 + batch_pad * hid_pad * out_bytes + param_bytes

    for (w_p, b_p, g_p, bt_p) in layers:
        flat_inputs += [w_p, b_p, g_p, bt_p]
        in_specs += [
            _resident_spec(w_p.shape),       # weight: resident, single-buffered
            _resident_spec((1, hid_pad)),    # bias
            _resident_spec((1, hid_pad)),    # LN gamma
            _resident_spec((1, hid_pad)),    # LN beta
        ]
        flops += 2 * batch_pad * w_p.shape[0] * hid_pad
        if not use_relu:
            transcendentals += batch_pad * hid_pad   # tanh
        transcendentals += batch_pad                  # rsqrt per row

    out_specs = pl.BlockSpec((tb, hid_pad), lambda i: (i, 0))
    out_shape = jax.ShapeDtypeStruct((batch_pad, hid_pad), out_dtype)

    # Always set the VMEM limit explicitly (v5e default is only 16 MiB; v7x
    # physical is 64 MiB) and never exceed the physical budget.
    vmem_limit = min(vmem_budget,
                     max(int(footprint(tb) * 1.3) + (1 << 20), 16 * 1024 * 1024))

    kernel = functools.partial(
        _mlp_fused_kernel,
        num_layers=num_layers, hidden_true=hidden,
        n_pad_lanes=hid_pad - hidden, use_relu=use_relu, eps=eps)

    result = pl.pallas_call(
        kernel,
        out_shape=out_shape,
        grid=(n_blocks,),
        in_specs=in_specs,
        out_specs=out_specs,
        compiler_params=pltpu.CompilerParams(
            dimension_semantics=("parallel",),
            vmem_limit_bytes=vmem_limit),
        cost_estimate=pl.CostEstimate(flops=flops,
                                      transcendentals=transcendentals,
                                      bytes_accessed=bytes_accessed),
    )(*flat_inputs)

    return result[:batch, :hidden]


# ---------------------------------------------------------------------------
# Parameter init (mirrors the PyTorch module's __init__ semantics)
# ---------------------------------------------------------------------------
def _orthogonal(key, shape, gain):
    rows, cols = shape
    a = jax.random.normal(key, (max(rows, cols), min(rows, cols)), jnp.float32)
    q, r = jnp.linalg.qr(a)
    q = q * jnp.sign(jnp.diag(r))
    if rows < cols:
        q = q.T
    return gain * q[:rows, :cols]


def init_mlp_params(key, input_dim, hidden_size, layer_N,
                    use_orthogonal=True, use_relu=True):
    gain = jnp.sqrt(2.0) if use_relu else (5.0 / 3.0)   # relu / tanh gain
    params = []
    dims = [(input_dim, hidden_size)] + [(hidden_size, hidden_size)] * layer_N
    for (d_in, d_out) in dims:
        key, sub = jax.random.split(key)
        if use_orthogonal:
            w_pt = _orthogonal(sub, (d_out, d_in), gain)        # PyTorch (out, in)
        else:
            bound = gain * jnp.sqrt(6.0 / (d_in + d_out))
            w_pt = jax.random.uniform(sub, (d_out, d_in), jnp.float32,
                                      -bound, bound)
        w = w_pt.T                                              # -> (in, out)
        b = jnp.zeros((1, d_out), jnp.float32)                  # Linear bias = 0
        gamma = jnp.ones((1, d_out), jnp.float32)               # LN weight = 1
        beta = jnp.zeros((1, d_out), jnp.float32)               # LN bias = 0
        params.append((w, b, gamma, beta))
    return params


# ---------------------------------------------------------------------------
# Pure-JAX reference (for correctness check)
# ---------------------------------------------------------------------------
def mlp_reference(x, params, *, use_relu=True, eps=1e-5):
    h = x
    for (w, b, g, bt) in params:
        z = h @ w + b
        z = jnp.maximum(z, 0.0) if use_relu else jnp.tanh(z)
        mean = jnp.mean(z, axis=-1, keepdims=True)
        var = jnp.mean((z - mean) ** 2, axis=-1, keepdims=True)
        h = (z - mean) * jax.lax.rsqrt(var + eps) * g + bt
    return h


# ---------------------------------------------------------------------------
if __name__ == "__main__":
    key = jax.random.PRNGKey(0)

    batch = 128
    input_dim = 32
    hidden_size = 32
    layer_N = 2
    use_orthogonal = True
    use_relu = True

    key, xkey = jax.random.split(key)
    x = jax.random.normal(xkey, (batch, input_dim), jnp.float32)

    params = init_mlp_params(key, input_dim, hidden_size, layer_N,
                             use_orthogonal=use_orthogonal, use_relu=use_relu)

    # Pad / stage parameters once (not per forward call).
    prepared = prepare_mlp_params(params, input_dim, use_bf16_matmul=False)

    out = mlp_layer_forward(x, prepared, use_relu=use_relu)
    jax.block_until_ready(out)

    ref = mlp_reference(x, params, use_relu=use_relu)
    assert out.shape == (batch, hidden_size)
    assert out.dtype == jnp.float32
    max_err = float(jnp.max(jnp.abs(out - ref)))
    assert max_err < 1e-4, f"mismatch vs reference: {max_err}"
    print("KERNEL_OK")
</pallas_src>

<mosaic_0001>
module attributes {stable_mosaic.version = 11 : i64} {
  func.func @_mlp_fused_kernel(%arg0: i32, %arg1: memref<64x128xf32, #tpu.memory_space<vmem>>, %arg2: memref<128x128xf32, #tpu.memory_space<vmem>>, %arg3: memref<1x128xf32, #tpu.memory_space<vmem>>, %arg4: memref<1x128xf32, #tpu.memory_space<vmem>>, %arg5: memref<1x128xf32, #tpu.memory_space<vmem>>, %arg6: memref<128x128xf32, #tpu.memory_space<vmem>>, %arg7: memref<1x128xf32, #tpu.memory_space<vmem>>, %arg8: memref<1x128xf32, #tpu.memory_space<vmem>>, %arg9: memref<1x128xf32, #tpu.memory_space<vmem>>, %arg10: memref<128x128xf32, #tpu.memory_space<vmem>>, %arg11: memref<1x128xf32, #tpu.memory_space<vmem>>, %arg12: memref<1x128xf32, #tpu.memory_space<vmem>>, %arg13: memref<1x128xf32, #tpu.memory_space<vmem>>, %arg14: memref<64x128xf32, #tpu.memory_space<vmem>>) attributes {dimension_semantics = [#tpu.dimension_semantics<parallel>], iteration_bounds = array<i64: 2>, scalar_prefetch = 0 : i64, scratch_operands = 0 : i64, tpu.core_type = #tpu.core_type<tc>, window_params = [{transform_indices = @transform_0, window_bounds = array<i64: 64, 128>}, {pipeline_mode = #tpu.pipeline_mode<synchronous>, transform_indices = @transform_1, window_bounds = array<i64: 128, 128>}, {pipeline_mode = #tpu.pipeline_mode<synchronous>, transform_indices = @transform_2, window_bounds = array<i64: 1, 128>}, {pipeline_mode = #tpu.pipeline_mode<synchronous>, transform_indices = @transform_3, window_bounds = array<i64: 1, 128>}, {pipeline_mode = #tpu.pipeline_mode<synchronous>, transform_indices = @transform_4, window_bounds = array<i64: 1, 128>}, {pipeline_mode = #tpu.pipeline_mode<synchronous>, transform_indices = @transform_5, window_bounds = array<i64: 128, 128>}, {pipeline_mode = #tpu.pipeline_mode<synchronous>, transform_indices = @transform_6, window_bounds = array<i64: 1, 128>}, {pipeline_mode = #tpu.pipeline_mode<synchronous>, transform_indices = @transform_7, window_bounds = array<i64: 1, 128>}, {pipeline_mode = #tpu.pipeline_mode<synchronous>, transform_indices = @transform_8, window_bounds = array<i64: 1, 128>}, {pipeline_mode = #tpu.pipeline_mode<synchronous>, transform_indices = @transform_9, window_bounds = array<i64: 128, 128>}, {pipeline_mode = #tpu.pipeline_mode<synchronous>, transform_indices = @transform_10, window_bounds = array<i64: 1, 128>}, {pipeline_mode = #tpu.pipeline_mode<synchronous>, transform_indices = @transform_11, window_bounds = array<i64: 1, 128>}, {pipeline_mode = #tpu.pipeline_mode<synchronous>, transform_indices = @transform_12, window_bounds = array<i64: 1, 128>}, {transform_indices = @transform_13, window_bounds = array<i64: 64, 128>}]} {
    %c0 = arith.constant 0 : index
    %c0_0 = arith.constant 0 : index
    %0 = vector.load %arg1[%c0, %c0_0] : memref<64x128xf32, #tpu.memory_space<vmem>>, vector<64x128xf32>
    %c0_1 = arith.constant 0 : index
    %c0_2 = arith.constant 0 : index
    %1 = vector.load %arg2[%c0_1, %c0_2] : memref<128x128xf32, #tpu.memory_space<vmem>>, vector<128x128xf32>
    %cst = arith.constant dense<0.000000e+00> : vector<64x128xf32>
    %2 = tpu.matmul %0, %1, %cst {dimension_numbers = #tpu.dot_dimension_numbers<[1], [0], [0], [1], [0, 0, 1, 1], [], []>} : vector<64x128xf32>, vector<128x128xf32>, vector<64x128xf32> -> vector<64x128xf32>
    %c0_3 = arith.constant 0 : index
    %c0_4 = arith.constant 0 : index
    %3 = vector.load %arg3[%c0_3, %c0_4] : memref<1x128xf32, #tpu.memory_space<vmem>>, vector<1x128xf32>
    %4 = vector.broadcast %3 : vector<1x128xf32> to vector<64x128xf32>
    %5 = arith.addf %2, %4 : vector<64x128xf32>
    %cst_5 = arith.constant 0.000000e+00 : f32
    %6 = vector.broadcast %cst_5 : f32 to vector<64x128xf32>
    %7 = arith.maximumf %5, %6 : vector<64x128xf32>
    %cst_6 = arith.constant dense<0.000000e+00> : vector<64xf32>
    %8 = vector.multi_reduction <add>, %7, %cst_6 [1] : vector<64x128xf32> to vector<64xf32>
    %9 = vector.shape_cast %8 : vector<64xf32> to vector<64x1xf32>
    %cst_7 = arith.constant 3.125000e-02 : f32
    %10 = vector.broadcast %cst_7 : f32 to vector<64x1xf32>
    %11 = arith.mulf %9, %10 : vector<64x1xf32>
    %12 = vector.broadcast %11 : vector<64x1xf32> to vector<64x128xf32>
    %13 = arith.subf %7, %12 : vector<64x128xf32>
    %14 = arith.mulf %13, %13 : vector<64x128xf32>
    %cst_8 = arith.constant dense<0.000000e+00> : vector<64xf32>
    %15 = vector.multi_reduction <add>, %14, %cst_8 [1] : vector<64x128xf32> to vector<64xf32>
    %16 = vector.shape_cast %15 : vector<64xf32> to vector<64x1xf32>
    %17 = arith.mulf %11, %11 : vector<64x1xf32>
    %cst_9 = arith.constant 9.600000e+01 : f32
    %18 = vector.broadcast %cst_9 : f32 to vector<64x1xf32>
    %19 = arith.mulf %18, %17 : vector<64x1xf32>
    %20 = arith.subf %16, %19 : vector<64x1xf32>
    %cst_10 = arith.constant 3.125000e-02 : f32
    %21 = vector.broadcast %cst_10 : f32 to vector<64x1xf32>
    %22 = arith.mulf %20, %21 : vector<64x1xf32>
    %cst_11 = arith.constant 0.000000e+00 : f32
    %23 = vector.broadcast %cst_11 : f32 to vector<64x1xf32>
    %24 = arith.maximumf %22, %23 : vector<64x1xf32>
    %cst_12 = arith.constant 9.99999974E-6 : f32
    %25 = vector.broadcast %cst_12 : f32 to vector<64x1xf32>
    %26 = arith.addf %24, %25 : vector<64x1xf32>
    %27 = math.rsqrt %26 : vector<64x1xf32>
    %28 = vector.broadcast %27 : vector<64x1xf32> to vector<64x128xf32>
    %29 = arith.mulf %13, %28 : vector<64x128xf32>
    %c0_13 = arith.constant 0 : index
    %c0_14 = arith.constant 0 : index
    %30 = vector.load %arg4[%c0_13, %c0_14] : memref<1x128xf32, #tpu.memory_space<vmem>>, vector<1x128xf32>
    %31 = vector.broadcast %30 : vector<1x128xf32> to vector<64x128xf32>
    %32 = arith.mulf %29, %31 : vector<64x128xf32>
    %c0_15 = arith.constant 0 : index
    %c0_16 = arith.constant 0 : index
    %33 = vector.load %arg5[%c0_15, %c0_16] : memref<1x128xf32, #tpu.memory_space<vmem>>, vector<1x128xf32>
    %34 = vector.broadcast %33 : vector<1x128xf32> to vector<64x128xf32>
    %35 = arith.addf %32, %34 : vector<64x128xf32>
    %c0_17 = arith.constant 0 : index
    %c0_18 = arith.constant 0 : index
    %36 = vector.load %arg6[%c0_17, %c0_18] : memref<128x128xf32, #tpu.memory_space<vmem>>, vector<128x128xf32>
    %cst_19 = arith.constant dense<0.000000e+00> : vector<64x128xf32>
    %37 = tpu.matmul %35, %36, %cst_19 {dimension_numbers = #tpu.dot_dimension_numbers<[1], [0], [0], [1], [0, 0, 1, 1], [], []>} : vector<64x128xf32>, vector<128x128xf32>, vector<64x128xf32> -> vector<64x128xf32>
    %c0_20 = arith.constant 0 : index
    %c0_21 = arith.constant 0 : index
    %38 = vector.load %arg7[%c0_20, %c0_21] : memref<1x128xf32, #tpu.memory_space<vmem>>, vector<1x128xf32>
    %39 = vector.broadcast %38 : vector<1x128xf32> to vector<64x128xf32>
    %40 = arith.addf %37, %39 : vector<64x128xf32>
    %cst_22 = arith.constant 0.000000e+00 : f32
    %41 = vector.broadcast %cst_22 : f32 to vector<64x128xf32>
    %42 = arith.maximumf %40, %41 : vector<64x128xf32>
    %cst_23 = arith.constant dense<0.000000e+00> : vector<64xf32>
    %43 = vector.multi_reduction <add>, %42, %cst_23 [1] : vector<64x128xf32> to vector<64xf32>
    %44 = vector.shape_cast %43 : vector<64xf32> to vector<64x1xf32>
    %cst_24 = arith.constant 3.125000e-02 : f32
    %45 = vector.broadcast %cst_24 : f32 to vector<64x1xf32>
    %46 = arith.mulf %44, %45 : vector<64x1xf32>
    %47 = vector.broadcast %46 : vector<64x1xf32> to vector<64x128xf32>
    %48 = arith.subf %42, %47 : vector<64x128xf32>
    %49 = arith.mulf %48, %48 : vector<64x128xf32>
    %cst_25 = arith.constant dense<0.000000e+00> : vector<64xf32>
    %50 = vector.multi_reduction <add>, %49, %cst_25 [1] : vector<64x128xf32> to vector<64xf32>
    %51 = vector.shape_cast %50 : vector<64xf32> to vector<64x1xf32>
    %52 = arith.mulf %46, %46 : vector<64x1xf32>
    %cst_26 = arith.constant 9.600000e+01 : f32
    %53 = vector.broadcast %cst_26 : f32 to vector<64x1xf32>
    %54 = arith.mulf %53, %52 : vector<64x1xf32>
    %55 = arith.subf %51, %54 : vector<64x1xf32>
    %cst_27 = arith.constant 3.125000e-02 : f32
    %56 = vector.broadcast %cst_27 : f32 to vector<64x1xf32>
    %57 = arith.mulf %55, %56 : vector<64x1xf32>
    %cst_28 = arith.constant 0.000000e+00 : f32
    %58 = vector.broadcast %cst_28 : f32 to vector<64x1xf32>
    %59 = arith.maximumf %57, %58 : vector<64x1xf32>
    %cst_29 = arith.constant 9.99999974E-6 : f32
    %60 = vector.broadcast %cst_29 : f32 to vector<64x1xf32>
    %61 = arith.addf %59, %60 : vector<64x1xf32>
    %62 = math.rsqrt %61 : vector<64x1xf32>
    %63 = vector.broadcast %62 : vector<64x1xf32> to vector<64x128xf32>
    %64 = arith.mulf %48, %63 : vector<64x128xf32>
    %c0_30 = arith.constant 0 : index
    %c0_31 = arith.constant 0 : index
    %65 = vector.load %arg8[%c0_30, %c0_31] : memref<1x128xf32, #tpu.memory_space<vmem>>, vector<1x128xf32>
    %66 = vector.broadcast %65 : vector<1x128xf32> to vector<64x128xf32>
    %67 = arith.mulf %64, %66 : vector<64x128xf32>
    %c0_32 = arith.constant 0 : index
    %c0_33 = arith.constant 0 : index
    %68 = vector.load %arg9[%c0_32, %c0_33] : memref<1x128xf32, #tpu.memory_space<vmem>>, vector<1x128xf32>
    %69 = vector.broadcast %68 : vector<1x128xf32> to vector<64x128xf32>
    %70 = arith.addf %67, %69 : vector<64x128xf32>
    %c0_34 = arith.constant 0 : index
    %c0_35 = arith.constant 0 : index
    %71 = vector.load %arg10[%c0_34, %c0_35] : memref<128x128xf32, #tpu.memory_space<vmem>>, vector<128x128xf32>
    %cst_36 = arith.constant dense<0.000000e+00> : vector<64x128xf32>
    %72 = tpu.matmul %70, %71, %cst_36 {dimension_numbers = #tpu.dot_dimension_numbers<[1], [0], [0], [1], [0, 0, 1, 1], [], []>} : vector<64x128xf32>, vector<128x128xf32>, vector<64x128xf32> -> vector<64x128xf32>
    %c0_37 = arith.constant 0 : index
    %c0_38 = arith.constant 0 : index
    %73 = vector.load %arg11[%c0_37, %c0_38] : memref<1x128xf32, #tpu.memory_space<vmem>>, vector<1x128xf32>
    %74 = vector.broadcast %73 : vector<1x128xf32> to vector<64x128xf32>
    %75 = arith.addf %72, %74 : vector<64x128xf32>
    %cst_39 = arith.constant 0.000000e+00 : f32
    %76 = vector.broadcast %cst_39 : f32 to vector<64x128xf32>
    %77 = arith.maximumf %75, %76 : vector<64x128xf32>
    %cst_40 = arith.constant dense<0.000000e+00> : vector<64xf32>
    %78 = vector.multi_reduction <add>, %77, %cst_40 [1] : vector<64x128xf32> to vector<64xf32>
    %79 = vector.shape_cast %78 : vector<64xf32> to vector<64x1xf32>
    %cst_41 = arith.constant 3.125000e-02 : f32
    %80 = vector.broadcast %cst_41 : f32 to vector<64x1xf32>
    %81 = arith.mulf %79, %80 : vector<64x1xf32>
    %82 = vector.broadcast %81 : vector<64x1xf32> to vector<64x128xf32>
    %83 = arith.subf %77, %82 : vector<64x128xf32>
    %84 = arith.mulf %83, %83 : vector<64x128xf32>
    %cst_42 = arith.constant dense<0.000000e+00> : vector<64xf32>
    %85 = vector.multi_reduction <add>, %84, %cst_42 [1] : vector<64x128xf32> to vector<64xf32>
    %86 = vector.shape_cast %85 : vector<64xf32> to vector<64x1xf32>
    %87 = arith.mulf %81, %81 : vector<64x1xf32>
    %cst_43 = arith.constant 9.600000e+01 : f32
    %88 = vector.broadcast %cst_43 : f32 to vector<64x1xf32>
    %89 = arith.mulf %88, %87 : vector<64x1xf32>
    %90 = arith.subf %86, %89 : vector<64x1xf32>
    %cst_44 = arith.constant 3.125000e-02 : f32
    %91 = vector.broadcast %cst_44 : f32 to vector<64x1xf32>
    %92 = arith.mulf %90, %91 : vector<64x1xf32>
    %cst_45 = arith.constant 0.000000e+00 : f32
    %93 = vector.broadcast %cst_45 : f32 to vector<64x1xf32>
    %94 = arith.maximumf %92, %93 : vector<64x1xf32>
    %cst_46 = arith.constant 9.99999974E-6 : f32
    %95 = vector.broadcast %cst_46 : f32 to vector<64x1xf32>
    %96 = arith.addf %94, %95 : vector<64x1xf32>
    %97 = math.rsqrt %96 : vector<64x1xf32>
    %98 = vector.broadcast %97 : vector<64x1xf32> to vector<64x128xf32>
    %99 = arith.mulf %83, %98 : vector<64x128xf32>
    %c0_47 = arith.constant 0 : index
    %c0_48 = arith.constant 0 : index
    %100 = vector.load %arg12[%c0_47, %c0_48] : memref<1x128xf32, #tpu.memory_space<vmem>>, vector<1x128xf32>
    %101 = vector.broadcast %100 : vector<1x128xf32> to vector<64x128xf32>
    %102 = arith.mulf %99, %101 : vector<64x128xf32>
    %c0_49 = arith.constant 0 : index
    %c0_50 = arith.constant 0 : index
    %103 = vector.load %arg13[%c0_49, %c0_50] : memref<1x128xf32, #tpu.memory_space<vmem>>, vector<1x128xf32>
    %104 = vector.broadcast %103 : vector<1x128xf32> to vector<64x128xf32>
    %105 = arith.addf %102, %104 : vector<64x128xf32>
    %c0_51 = arith.constant 0 : index
    %c0_52 = arith.constant 0 : index
    %106 = vector.load %arg14[%c0_51, %c0_52] : memref<64x128xf32, #tpu.memory_space<vmem>>, vector<64x128xf32>
    tpu.vector_store %arg14[%c0_51, %c0_52], %105 {strides = array<i32>} : memref<64x128xf32, #tpu.memory_space<vmem>>, vector<64x128xf32>,
    return
  }
  func.func @transform_0(%arg0: i32) -> (i32, i32) {
    %c0_i32 = arith.constant 0 : i32
    %c0_i32_0 = arith.constant 0 : i32
    return %arg0, %c0_i32 : i32, i32
  }
  func.func @transform_1(%arg0: i32) -> (i32, i32) {
    %c0_i32 = arith.constant 0 : i32
    %c0_i32_0 = arith.constant 0 : i32
    %c0_i32_1 = arith.constant 0 : i32
    return %c0_i32, %c0_i32_0 : i32, i32
  }
  func.func @transform_2(%arg0: i32) -> (i32, i32) {
    %c0_i32 = arith.constant 0 : i32
    %c0_i32_0 = arith.constant 0 : i32
    %c0_i32_1 = arith.constant 0 : i32
    return %c0_i32, %c0_i32_0 : i32, i32
  }
  func.func @transform_3(%arg0: i32) -> (i32, i32) {
    %c0_i32 = arith.constant 0 : i32
    %c0_i32_0 = arith.constant 0 : i32
    %c0_i32_1 = arith.constant 0 : i32
    return %c0_i32, %c0_i32_0 : i32, i32
  }
  func.func @transform_4(%arg0: i32) -> (i32, i32) {
    %c0_i32 = arith.constant 0 : i32
    %c0_i32_0 = arith.constant 0 : i32
    %c0_i32_1 = arith.constant 0 : i32
    return %c0_i32, %c0_i32_0 : i32, i32
  }
  func.func @transform_5(%arg0: i32) -> (i32, i32) {
    %c0_i32 = arith.constant 0 : i32
    %c0_i32_0 = arith.constant 0 : i32
    %c0_i32_1 = arith.constant 0 : i32
    return %c0_i32, %c0_i32_0 : i32, i32
  }
  func.func @transform_6(%arg0: i32) -> (i32, i32) {
    %c0_i32 = arith.constant 0 : i32
    %c0_i32_0 = arith.constant 0 : i32
    %c0_i32_1 = arith.constant 0 : i32
    return %c0_i32, %c0_i32_0 : i32, i32
  }
  func.func @transform_7(%arg0: i32) -> (i32, i32) {
    %c0_i32 = arith.constant 0 : i32
    %c0_i32_0 = arith.constant 0 : i32
    %c0_i32_1 = arith.constant 0 : i32
    return %c0_i32, %c0_i32_0 : i32, i32
  }
  func.func @transform_8(%arg0: i32) -> (i32, i32) {
    %c0_i32 = arith.constant 0 : i32
    %c0_i32_0 = arith.constant 0 : i32
    %c0_i32_1 = arith.constant 0 : i32
    return %c0_i32, %c0_i32_0 : i32, i32
  }
  func.func @transform_9(%arg0: i32) -> (i32, i32) {
    %c0_i32 = arith.constant 0 : i32
    %c0_i32_0 = arith.constant 0 : i32
    %c0_i32_1 = arith.constant 0 : i32
    return %c0_i32, %c0_i32_0 : i32, i32
  }
  func.func @transform_10(%arg0: i32) -> (i32, i32) {
    %c0_i32 = arith.constant 0 : i32
    %c0_i32_0 = arith.constant 0 : i32
    %c0_i32_1 = arith.constant 0 : i32
    return %c0_i32, %c0_i32_0 : i32, i32
  }
  func.func @transform_11(%arg0: i32) -> (i32, i32) {
    %c0_i32 = arith.constant 0 : i32
    %c0_i32_0 = arith.constant 0 : i32
    %c0_i32_1 = arith.constant 0 : i32
    return %c0_i32, %c0_i32_0 : i32, i32
  }
  func.func @transform_12(%arg0: i32) -> (i32, i32) {
    %c0_i32 = arith.constant 0 : i32
    %c0_i32_0 = arith.constant 0 : i32
    %c0_i32_1 = arith.constant 0 : i32
    return %c0_i32, %c0_i32_0 : i32, i32
  }
  func.func @transform_13(%arg0: i32) -> (i32, i32) {
    %c0_i32 = arith.constant 0 : i32
    %c0_i32_0 = arith.constant 0 : i32
    return %arg0, %c0_i32 : i32, i32
  }
}

</mosaic_0001>

<llo_original>
// kernel: tpu_custom_call.1
$region0: #{tpu_custom_call.1}
  #allocation0 [shape = 'u32[]', space=smem, size = 0x4, offset = 0x4, fixed_abs, tag = 'smem constant byte address 0x4 - core index']
  #allocation1 [shape = 'u32[144,128]{1,0:T(1,128)}', space=vmem, size = 0x12000, scoped, tag = 'internal scratch']
  %s0 = inlined_call_operand.hbm [shape: f32[128,128], index: 0, kind: input, shape index: {}]
  %s1 = inlined_call_operand.hbm [shape: f32[128,128], index: 1, kind: input, shape index: {}]
  %s2 = inlined_call_operand.vmem [shape: f32[1,128], index: 2, kind: input, shape index: {}]
  %s3 = inlined_call_operand.vmem [shape: f32[1,128], index: 3, kind: input, shape index: {}]
  %s4 = inlined_call_operand.vmem [shape: f32[1,128], index: 4, kind: input, shape index: {}]
  %s5 = inlined_call_operand.hbm [shape: f32[128,128], index: 5, kind: input, shape index: {}]
  %s6 = inlined_call_operand.vmem [shape: f32[1,128], index: 6, kind: input, shape index: {}]
  %s7 = inlined_call_operand.vmem [shape: f32[1,128], index: 7, kind: input, shape index: {}]
  %s8 = inlined_call_operand.vmem [shape: f32[1,128], index: 8, kind: input, shape index: {}]
  %s9 = inlined_call_operand.hbm [shape: f32[128,128], index: 9, kind: input, shape index: {}]
  %s10 = inlined_call_operand.vmem [shape: f32[1,128], index: 10, kind: input, shape index: {}]
  %s11 = inlined_call_operand.vmem [shape: f32[1,128], index: 11, kind: input, shape index: {}]
  %s12 = inlined_call_operand.vmem [shape: f32[1,128], index: 12, kind: input, shape index: {}]
  %s13 = inlined_call_operand.hbm [shape: f32[128,128], index: 13, kind: output, shape index: {}]
  %s14 = sld [smem:[#allocation0]]
  $region101: #{tpu_custom_call.1} parent=0
    _
  %s16 = ssub.s32 1, %s14
  %s17 = scalar_select 0, %s16, %s14
  $region1: #{tpu_custom_call.1} parent=0
    #allocation2 [shape = 'u8[65536]{0}', space=vmem, size = 0x10000, scoped, tag = 'input window, operand 0']
    #allocation3 [shape = 's32[2]{0}', space=sflag, size = 0x8, scoped, tag = 'scoped memory for tpu_custom_call.1']
    #allocation4 [shape = 's32[2]{0}', space=sflag, size = 0x8, scoped, tag = 'scoped memory for tpu_custom_call.1']
    #allocation5 [shape = 'u8[65536]{0}', space=vmem, size = 0x10000, scoped, tag = 'input window, operand 1, single buffered']
    #allocation6 [shape = 's32[1]{0}', space=sflag, size = 0x4, scoped, tag = 'scoped memory for tpu_custom_call.1']
    #allocation7 [shape = 'u8[65536]{0}', space=vmem, size = 0x10000, scoped, tag = 'input window, operand 5, single buffered']
    #allocation8 [shape = 'u8[65536]{0}', space=vmem, size = 0x10000, scoped, tag = 'input window, operand 9, single buffered']
    #allocation9 [shape = 's32[1]{0}', space=sflag, size = 0x4, scoped, tag = 'scoped memory for tpu_custom_call.1']
    #allocation10 [shape = 'u8[65536]{0}', space=vmem, size = 0x10000, scoped, tag = 'output window, operand 0']
    %18 = vsyncpa [#allocation3], 0
    %s19 = scalar_lea.sflag [#allocation3], 1
    %20 = vsyncpa %s19, 0
    %21 = vsyncpa [#allocation6], 0
    %22 = vsyncpa [#allocation9], 0
    %23 = vsyncpa [#allocation4], 0
    %s24 = scalar_lea.sflag [#allocation4], 1
    %25 = vsyncpa %s24, 0
    loop: start=0, step=1, limit=4
    $region2: #{tpu_custom_call.1} parent=1 // loop_pre_header
      _
    $region3: #{tpu_custom_call.1} parent=1 // loop_header
      %s27 = sphi 0, %s31
      %p28 = scmp.ge.s32.totalorder %s27, 4
      %s37 = sphi 0, %s39
      %s40 = sphi 0, %s37
      %s41 = sphi 0, %s40
      %s57 = sphi 0, %s41
      %s61 = sphi 0, %s61
      %s63 = sphi 0, %s61
      %s64 = sphi 0, %s63
      %s78 = sphi 0, %s64
      %s82 = sphi 0, %s82
      %s84 = sphi 0, %s82
      %s85 = sphi 0, %s84
      %s99 = sphi 0, %s85
      %s103 = sphi 0, %s103
      %s105 = sphi 0, %s103
      %s106 = sphi 0, %s105
      %s120 = sphi 0, %s106
      %s124 = sphi 0, %s124
      %s126 = sphi 0, %s124
      %s127 = sphi 0, %s126
      %s141 = sphi 0, %s127
      %s145 = sphi 0, %s145
      %s147 = sphi 0, %s145
      %s148 = sphi 0, %s147
      %s162 = sphi 0, %s148
      %s166 = sphi 0, %s166
      %s168 = sphi 0, %s166
      %s169 = sphi 0, %s168
      %s183 = sphi 0, %s169
      %s187 = sphi 0, %s187
      %s189 = sphi 0, %s187
      %s190 = sphi 0, %s189
      %s204 = sphi 0, %s190
      %s208 = sphi 0, %s208
      %s210 = sphi 0, %s208
      %s211 = sphi 0, %s210
      %s225 = sphi 0, %s211
      %s229 = sphi 0, %s229
      %s231 = sphi 0, %s229
      %s232 = sphi 0, %s231
      %s246 = sphi 0, %s232
      %s250 = sphi 0, %s250
      %s252 = sphi 0, %s250
      %s253 = sphi 0, %s252
      %s267 = sphi 0, %s253
      %s271 = sphi 0, %s271
      %s273 = sphi 0, %s271
      %s274 = sphi 0, %s273
      %s288 = sphi 0, %s274
      %s292 = sphi 0, %s292
      %s294 = sphi 0, %s292
      %s295 = sphi 0, %s294
      %s309 = sphi 0, %s295
      %s315 = sphi 0, %s317
      %s318 = sphi 0, %s315
      %s319 = sphi 0, %s318
      %s335 = sphi 0, %s319
    $region4: #{tpu_custom_call.1} parent=1 // loop_header_branch
      %30 = sbr.rel (%p28) target = $region8
    $region5: #{tpu_custom_call.1} parent=1 // loop_body
      %s32 = ssub.s32 %s27, 1
      %s33 = ssub.s32 %s27, 2
      %s34 = sadd.s32 %s27, 1
      %s35 = ssub.s32 %s27, %s34
      %p36 = scmp.eq.s32.totalorder %s35, 0
      %s38 = sadd.s32 %s37, 1
      %s39 = scalar_select %p36, %s37, %s38
      %p42 = pneg %p36
      %p43 = scmp.eq.s32.totalorder %s27, 1
      %p44 = por %p42, %p43
      %p45 = scmp.ne.s32.totalorder %s37, %s40
      %p46 = scmp.eq.s32.totalorder %s27, 0
      %p47 = por %p45, %p46
      %p48 = scmp.ne.s32.totalorder %s37, %s40
      %p49 = scmp.eq.s32.totalorder %s32, 1
      %p50 = por %p48, %p49
      %p51 = scmp.ne.s32.totalorder %s40, %s41
      %p52 = scmp.eq.s32.totalorder %s32, 0
      %p53 = por %p51, %p52
      %p54 = scmp.ne.s32.totalorder %s40, %s41
      %p55 = scmp.eq.s32.totalorder %s33, 1
      %p56 = por %p54, %p55
      %p58 = scmp.ne.s32.totalorder %s41, %s57
      %p59 = scmp.eq.s32.totalorder %s33, 0
      %p60 = por %p58, %p59
      %s62 = sadd.s32 %s61, 1
      %p65 = scmp.eq.s32.totalorder %s27, 1
      %p66 = scmp.ne.s32.totalorder %s61, %s63
      %p67 = scmp.eq.s32.totalorder %s27, 0
      %p68 = por %p66, %p67
      %p69 = scmp.ne.s32.totalorder %s61, %s63
      %p70 = scmp.eq.s32.totalorder %s32, 1
      %p71 = por %p69, %p70
      %p72 = scmp.ne.s32.totalorder %s63, %s64
      %p73 = scmp.eq.s32.totalorder %s32, 0
      %p74 = por %p72, %p73
      %p75 = scmp.ne.s32.totalorder %s63, %s64
      %p76 = scmp.eq.s32.totalorder %s33, 1
      %p77 = por %p75, %p76
      %p79 = scmp.ne.s32.totalorder %s64, %s78
      %p80 = scmp.eq.s32.totalorder %s33, 0
      %p81 = por %p79, %p80
      %s83 = sadd.s32 %s82, 1
      %p86 = scmp.eq.s32.totalorder %s27, 1
      %p87 = scmp.ne.s32.totalorder %s82, %s84
      %p88 = scmp.eq.s32.totalorder %s27, 0
      %p89 = por %p87, %p88
      %p90 = scmp.ne.s32.totalorder %s82, %s84
      %p91 = scmp.eq.s32.totalorder %s32, 1
      %p92 = por %p90, %p91
      %p93 = scmp.ne.s32.totalorder %s84, %s85
      %p94 = scmp.eq.s32.totalorder %s32, 0
      %p95 = por %p93, %p94
      %p96 = scmp.ne.s32.totalorder %s84, %s85
      %p97 = scmp.eq.s32.totalorder %s33, 1
      %p98 = por %p96, %p97
      %p100 = scmp.ne.s32.totalorder %s85, %s99
      %p101 = scmp.eq.s32.totalorder %s33, 0
      %p102 = por %p100, %p101
      %s104 = sadd.s32 %s103, 1
      %p107 = scmp.eq.s32.totalorder %s27, 1
      %p108 = scmp.ne.s32.totalorder %s103, %s105
      %p109 = scmp.eq.s32.totalorder %s27, 0
      %p110 = por %p108, %p109
      %p111 = scmp.ne.s32.totalorder %s103, %s105
      %p112 = scmp.eq.s32.totalorder %s32, 1
      %p113 = por %p111, %p112
      %p114 = scmp.ne.s32.totalorder %s105, %s106
      %p115 = scmp.eq.s32.totalorder %s32, 0
      %p116 = por %p114, %p115
      %p117 = scmp.ne.s32.totalorder %s105, %s106
      %p118 = scmp.eq.s32.totalorder %s33, 1
      %p119 = por %p117, %p118
      %p121 = scmp.ne.s32.totalorder %s106, %s120
      %p122 = scmp.eq.s32.totalorder %s33, 0
      %p123 = por %p121, %p122
      %s125 = sadd.s32 %s124, 1
      %p128 = scmp.eq.s32.totalorder %s27, 1
      %p129 = scmp.ne.s32.totalorder %s124, %s126
      %p130 = scmp.eq.s32.totalorder %s27, 0
      %p131 = por %p129, %p130
      %p132 = scmp.ne.s32.totalorder %s124, %s126
      %p133 = scmp.eq.s32.totalorder %s32, 1
      %p134 = por %p132, %p133
      %p135 = scmp.ne.s32.totalorder %s126, %s127
      %p136 = scmp.eq.s32.totalorder %s32, 0
      %p137 = por %p135, %p136
      %p138 = scmp.ne.s32.totalorder %s126, %s127
      %p139 = scmp.eq.s32.totalorder %s33, 1
      %p140 = por %p138, %p139
      %p142 = scmp.ne.s32.totalorder %s127, %s141
      %p143 = scmp.eq.s32.totalorder %s33, 0
      %p144 = por %p142, %p143
      %s146 = sadd.s32 %s145, 1
      %p149 = scmp.eq.s32.totalorder %s27, 1
      %p150 = scmp.ne.s32.totalorder %s145, %s147
      %p151 = scmp.eq.s32.totalorder %s27, 0
      %p152 = por %p150, %p151
      %p153 = scmp.ne.s32.totalorder %s145, %s147
      %p154 = scmp.eq.s32.totalorder %s32, 1
      %p155 = por %p153, %p154
      %p156 = scmp.ne.s32.totalorder %s147, %s148
      %p157 = scmp.eq.s32.totalorder %s32, 0
      %p158 = por %p156, %p157
      %p159 = scmp.ne.s32.totalorder %s147, %s148
      %p160 = scmp.eq.s32.totalorder %s33, 1
      %p161 = por %p159, %p160
      %p163 = scmp.ne.s32.totalorder %s148, %s162
      %p164 = scmp.eq.s32.totalorder %s33, 0
      %p165 = por %p163, %p164
      %s167 = sadd.s32 %s166, 1
      %p170 = scmp.eq.s32.totalorder %s27, 1
      %p171 = scmp.ne.s32.totalorder %s166, %s168
      %p172 = scmp.eq.s32.totalorder %s27, 0
      %p173 = por %p171, %p172
      %p174 = scmp.ne.s32.totalorder %s166, %s168
      %p175 = scmp.eq.s32.totalorder %s32, 1
      %p176 = por %p174, %p175
      %p177 = scmp.ne.s32.totalorder %s168, %s169
      %p178 = scmp.eq.s32.totalorder %s32, 0
      %p179 = por %p177, %p178
      %p180 = scmp.ne.s32.totalorder %s168, %s169
      %p181 = scmp.eq.s32.totalorder %s33, 1
      %p182 = por %p180, %p181
      %p184 = scmp.ne.s32.totalorder %s169, %s183
      %p185 = scmp.eq.s32.totalorder %s33, 0
      %p186 = por %p184, %p185
      %s188 = sadd.s32 %s187, 1
      %p191 = scmp.eq.s32.totalorder %s27, 1
      %p192 = scmp.ne.s32.totalorder %s187, %s189
      %p193 = scmp.eq.s32.totalorder %s27, 0
      %p194 = por %p192, %p193
      %p195 = scmp.ne.s32.totalorder %s187, %s189
      %p196 = scmp.eq.s32.totalorder %s32, 1
      %p197 = por %p195, %p196
      %p198 = scmp.ne.s32.totalorder %s189, %s190
      %p199 = scmp.eq.s32.totalorder %s32, 0
      %p200 = por %p198, %p199
      %p201 = scmp.ne.s32.totalorder %s189, %s190
      %p202 = scmp.eq.s32.totalorder %s33, 1
      %p203 = por %p201, %p202
      %p205 = scmp.ne.s32.totalorder %s190, %s204
      %p206 = scmp.eq.s32.totalorder %s33, 0
      %p207 = por %p205, %p206
      %s209 = sadd.s32 %s208, 1
      %p212 = scmp.eq.s32.totalorder %s27, 1
      %p213 = scmp.ne.s32.totalorder %s208, %s210
      %p214 = scmp.eq.s32.totalorder %s27, 0
      %p215 = por %p213, %p214
      %p216 = scmp.ne.s32.totalorder %s208, %s210
      %p217 = scmp.eq.s32.totalorder %s32, 1
      %p218 = por %p216, %p217
      %p219 = scmp.ne.s32.totalorder %s210, %s211
      %p220 = scmp.eq.s32.totalorder %s32, 0
      %p221 = por %p219, %p220
      %p222 = scmp.ne.s32.totalorder %s210, %s211
      %p223 = scmp.eq.s32.totalorder %s33, 1
      %p224 = por %p222, %p223
      %p226 = scmp.ne.s32.totalorder %s211, %s225
      %p227 = scmp.eq.s32.totalorder %s33, 0
      %p228 = por %p226, %p227
      %s230 = sadd.s32 %s229, 1
      %p233 = scmp.eq.s32.totalorder %s27, 1
      %p234 = scmp.ne.s32.totalorder %s229, %s231
      %p235 = scmp.eq.s32.totalorder %s27, 0
      %p236 = por %p234, %p235
      %p237 = scmp.ne.s32.totalorder %s229, %s231
      %p238 = scmp.eq.s32.totalorder %s32, 1
      %p239 = por %p237, %p238
      %p240 = scmp.ne.s32.totalorder %s231, %s232
      %p241 = scmp.eq.s32.totalorder %s32, 0
      %p242 = por %p240, %p241
      %p243 = scmp.ne.s32.totalorder %s231, %s232
      %p244 = scmp.eq.s32.totalorder %s33, 1
      %p245 = por %p243, %p244
      %p247 = scmp.ne.s32.totalorder %s232, %s246
      %p248 = scmp.eq.s32.totalorder %s33, 0
      %p249 = por %p247, %p248
      %s251 = sadd.s32 %s250, 1
      %p254 = scmp.eq.s32.totalorder %s27, 1
      %p255 = scmp.ne.s32.totalorder %s250, %s252
      %p256 = scmp.eq.s32.totalorder %s27, 0
      %p257 = por %p255, %p256
      %p258 = scmp.ne.s32.totalorder %s250, %s252
      %p259 = scmp.eq.s32.totalorder %s32, 1
      %p260 = por %p258, %p259
      %p261 = scmp.ne.s32.totalorder %s252, %s253
      %p262 = scmp.eq.s32.totalorder %s32, 0
      %p263 = por %p261, %p262
      %p264 = scmp.ne.s32.totalorder %s252, %s253
      %p265 = scmp.eq.s32.totalorder %s33, 1
      %p266 = por %p264, %p265
      %p268 = scmp.ne.s32.totalorder %s253, %s267
      %p269 = scmp.eq.s32.totalorder %s33, 0
      %p270 = por %p268, %p269
      %s272 = sadd.s32 %s271, 1
      %p275 = scmp.eq.s32.totalorder %s27, 1
      %p276 = scmp.ne.s32.totalorder %s271, %s273
      %p277 = scmp.eq.s32.totalorder %s27, 0
      %p278 = por %p276, %p277
      %p279 = scmp.ne.s32.totalorder %s271, %s273
      %p280 = scmp.eq.s32.totalorder %s32, 1
      %p281 = por %p279, %p280
      %p282 = scmp.ne.s32.totalorder %s273, %s274
      %p283 = scmp.eq.s32.totalorder %s32, 0
      %p284 = por %p282, %p283
      %p285 = scmp.ne.s32.totalorder %s273, %s274
      %p286 = scmp.eq.s32.totalorder %s33, 1
      %p287 = por %p285, %p286
      %p289 = scmp.ne.s32.totalorder %s274, %s288
      %p290 = scmp.eq.s32.totalorder %s33, 0
      %p291 = por %p289, %p290
      %s293 = sadd.s32 %s292, 1
      %p296 = scmp.eq.s32.totalorder %s27, 1
      %p297 = scmp.ne.s32.totalorder %s292, %s294
      %p298 = scmp.eq.s32.totalorder %s27, 0
      %p299 = por %p297, %p298
      %p300 = scmp.ne.s32.totalorder %s292, %s294
      %p301 = scmp.eq.s32.totalorder %s32, 1
      %p302 = por %p300, %p301
      %p303 = scmp.ne.s32.totalorder %s294, %s295
      %p304 = scmp.eq.s32.totalorder %s32, 0
      %p305 = por %p303, %p304
      %p306 = scmp.ne.s32.totalorder %s294, %s295
      %p307 = scmp.eq.s32.totalorder %s33, 1
      %p308 = por %p306, %p307
      %p310 = scmp.ne.s32.totalorder %s295, %s309
      %p311 = scmp.eq.s32.totalorder %s33, 0
      %p312 = por %p310, %p311
      %s313 = ssub.s32 %s27, %s34
      %p314 = scmp.eq.s32.totalorder %s313, 0
      %s316 = sadd.s32 %s315, 1
      %s317 = scalar_select %p314, %s315, %s316
      %p320 = pneg %p314
      %p321 = scmp.eq.s32.totalorder %s27, 1
      %p322 = por %p320, %p321
      %p323 = scmp.ne.s32.totalorder %s315, %s318
      %p324 = scmp.eq.s32.totalorder %s27, 0
      %p325 = por %p323, %p324
      %p326 = scmp.ne.s32.totalorder %s315, %s318
      %p327 = scmp.eq.s32.totalorder %s32, 1
      %p328 = por %p326, %p327
      %p329 = scmp.ne.s32.totalorder %s318, %s319
      %p330 = scmp.eq.s32.totalorder %s32, 0
      %p331 = por %p329, %p330
      %p332 = scmp.ne.s32.totalorder %s318, %s319
      %p333 = scmp.eq.s32.totalorder %s33, 1
      %p334 = por %p332, %p333
      %p336 = scmp.ne.s32.totalorder %s319, %s335
      %p337 = scmp.eq.s32.totalorder %s33, 0
      %p338 = por %p336, %p337
      %p339 = scmp.le.s32.totalorder 1, %s27
      %p340 = scmp.lt.s32.totalorder %s27, 3
      %p341 = pnand %p339, %p340
      %p342 = pneg %p341
      // Predicated region
      $region9: #{tpu_custom_call.1} parent=5 // pred_check
        _
      $region10: #{tpu_custom_call.1} parent=5 // pred_check_branch
        %344 = sbr.rel (%p341) target = $region12
      $region11: #{tpu_custom_call.1} parent=5 // pred_region
        %s345 = ssub.s32 %s27, 1
        // Predicated region
        $region13: #{tpu_custom_call.1} parent=11 // pred_check
          %p346 = pneg %p74
        $region14: #{tpu_custom_call.1} parent=11 // pred_check_branch
          %348 = sbr.rel (%p346) target = $region16
        $region15: #{tpu_custom_call.1} parent=11 // pred_region
          %s350 = ssub.s32 2048, 2048
          %351 = vsyncadd [#allocation6], %s350
          %s352 = sshll.u32 [#allocation5], 4
          %s353 = int_to_ptr.vmem [resolvable:$true] %s352
          %358 = dma.hbm_to_vmem [thread:$0]  %s1, 2048, %s353, [#allocation6], 128, 128, 8
        $region16: #{tpu_custom_call.1} parent=11 // pred_fallthru
          _
        // Predicated region
        $region17: #{tpu_custom_call.1} parent=11 // pred_check
          %p359 = pneg %p95
        $region18: #{tpu_custom_call.1} parent=11 // pred_check_branch
          %361 = sbr.rel (%p359) target = $region20
        $region19: #{tpu_custom_call.1} parent=11 // pred_region
          _
        $region20: #{tpu_custom_call.1} parent=11 // pred_fallthru
          _
        // Predicated region
        $region21: #{tpu_custom_call.1} parent=11 // pred_check
          %p362 = pneg %p116
        $region22: #{tpu_custom_call.1} parent=11 // pred_check_branch
          %364 = sbr.rel (%p362) target = $region24
        $region23: #{tpu_custom_call.1} parent=11 // pred_region
          _
        $region24: #{tpu_custom_call.1} parent=11 // pred_fallthru
          _
        // Predicated region
        $region25: #{tpu_custom_call.1} parent=11 // pred_check
          %p365 = pneg %p137
        $region26: #{tpu_custom_call.1} parent=11 // pred_check_branch
          %367 = sbr.rel (%p365) target = $region28
        $region27: #{tpu_custom_call.1} parent=11 // pred_region
          _
        $region28: #{tpu_custom_call.1} parent=11 // pred_fallthru
          _
        // Predicated region
        $region29: #{tpu_custom_call.1} parent=11 // pred_check
          %p368 = pneg %p158
        $region30: #{tpu_custom_call.1} parent=11 // pred_check_branch
          %370 = sbr.rel (%p368) target = $region32
        $region31: #{tpu_custom_call.1} parent=11 // pred_region
          %s372 = ssub.s32 2048, 2048
          %373 = vsyncadd [#allocation6], %s372
          %s374 = sshll.u32 [#allocation7], 4
          %s375 = int_to_ptr.vmem [resolvable:$true] %s374
          %380 = dma.hbm_to_vmem [thread:$0]  %s5, 2048, %s375, [#allocation6], 128, 128, 8
        $region32: #{tpu_custom_call.1} parent=11 // pred_fallthru
          _
        // Predicated region
        $region33: #{tpu_custom_call.1} parent=11 // pred_check
          %p381 = pneg %p179
        $region34: #{tpu_custom_call.1} parent=11 // pred_check_branch
          %383 = sbr.rel (%p381) target = $region36
        $region35: #{tpu_custom_call.1} parent=11 // pred_region
          _
        $region36: #{tpu_custom_call.1} parent=11 // pred_fallthru
          _
        // Predicated region
        $region37: #{tpu_custom_call.1} parent=11 // pred_check
          %p384 = pneg %p200
        $region38: #{tpu_custom_call.1} parent=11 // pred_check_branch
          %386 = sbr.rel (%p384) target = $region40
        $region39: #{tpu_custom_call.1} parent=11 // pred_region
          _
        $region40: #{tpu_custom_call.1} parent=11 // pred_fallthru
          _
        // Predicated region
        $region41: #{tpu_custom_call.1} parent=11 // pred_check
          %p387 = pneg %p221
        $region42: #{tpu_custom_call.1} parent=11 // pred_check_branch
          %389 = sbr.rel (%p387) target = $region44
        $region43: #{tpu_custom_call.1} parent=11 // pred_region
          _
        $region44: #{tpu_custom_call.1} parent=11 // pred_fallthru
          _
        // Predicated region
        $region45: #{tpu_custom_call.1} parent=11 // pred_check
          %p390 = pneg %p242
        $region46: #{tpu_custom_call.1} parent=11 // pred_check_branch
          %392 = sbr.rel (%p390) target = $region48
        $region47: #{tpu_custom_call.1} parent=11 // pred_region
          %s394 = ssub.s32 2048, 2048
          %395 = vsyncadd [#allocation9], %s394
          %s396 = sshll.u32 [#allocation8], 4
          %s397 = int_to_ptr.vmem [resolvable:$true] %s396
          %402 = dma.hbm_to_vmem [thread:$0]  %s9, 2048, %s397, [#allocation9], 128, 128, 8
        $region48: #{tpu_custom_call.1} parent=11 // pred_fallthru
          _
        // Predicated region
        $region49: #{tpu_custom_call.1} parent=11 // pred_check
          %p403 = pneg %p263
        $region50: #{tpu_custom_call.1} parent=11 // pred_check_branch
          %405 = sbr.rel (%p403) target = $region52
        $region51: #{tpu_custom_call.1} parent=11 // pred_region
          _
        $region52: #{tpu_custom_call.1} parent=11 // pred_fallthru
          _
        // Predicated region
        $region53: #{tpu_custom_call.1} parent=11 // pred_check
          %p406 = pneg %p284
        $region54: #{tpu_custom_call.1} parent=11 // pred_check_branch
          %408 = sbr.rel (%p406) target = $region56
        $region55: #{tpu_custom_call.1} parent=11 // pred_region
          _
        $region56: #{tpu_custom_call.1} parent=11 // pred_fallthru
          _
        // Predicated region
        $region57: #{tpu_custom_call.1} parent=11 // pred_check
          %p409 = pneg %p305
        $region58: #{tpu_custom_call.1} parent=11 // pred_check_branch
          %411 = sbr.rel (%p409) target = $region60
        $region59: #{tpu_custom_call.1} parent=11 // pred_region
          _
        $region60: #{tpu_custom_call.1} parent=11 // pred_fallthru
          _
      $region12: #{tpu_custom_call.1} parent=5 // pred_fallthru
        _
      %p412 = scmp.lt.s32.totalorder %s27, 2
      // Predicated region
      $region61: #{tpu_custom_call.1} parent=5 // pred_check
        %p413 = pneg %p412
      $region62: #{tpu_custom_call.1} parent=5 // pred_check_branch
        %415 = sbr.rel (%p413) target = $region64
      $region63: #{tpu_custom_call.1} parent=5 // pred_region
        // Predicated region
        $region65: #{tpu_custom_call.1} parent=63 // pred_check
          %p416 = pneg %p47
        $region66: #{tpu_custom_call.1} parent=63 // pred_check_branch
          %418 = sbr.rel (%p416) target = $region68
        $region67: #{tpu_custom_call.1} parent=63 // pred_region
          %s419 = sand.u32 %s37, 1
          %s420 = scalar_lea.sflag [#allocation3], %s419
          %s421 = sand.u32 %s37, 1
          %s422 = smul.addr %s421, 64
          %s423 = scalar_lea.vmem [#allocation2], %s422
          %s424 = smul.u32 8, %s27
          %s426 = ssub.s32 1024, 1024
          %427 = vsyncadd %s420, %s426
          %s428 = smul.addr %s424, 128
          %s429 = scalar_lea.hbm %s0, %s428
          %s430 = sshll.u32 %s423, 4
          %s431 = int_to_ptr.vmem [resolvable:$true] %s430
          %436 = dma.hbm_to_vmem [thread:$0]  %s429, 1024, %s431, %s420, 128, 128, 8
        $region68: #{tpu_custom_call.1} parent=63 // pred_fallthru
          _
      $region64: #{tpu_custom_call.1} parent=5 // pred_fallthru
        _
      %p437 = scmp.le.s32.totalorder 1, %s27
      %p438 = scmp.lt.s32.totalorder %s27, 3
      %p439 = pnand %p437, %p438
      %p440 = pneg %p439
      // Predicated region
      $region69: #{tpu_custom_call.1} parent=5 // pred_check
        _
      $region70: #{tpu_custom_call.1} parent=5 // pred_check_branch
        %442 = sbr.rel (%p439) target = $region72
      $region71: #{tpu_custom_call.1} parent=5 // pred_region
        %s443 = ssub.s32 %s27, 1
        %s444 = sand.u32 %s40, 1
        %s445 = scalar_lea.sflag [#allocation3], %s444
        %s446 = sand.u32 %s40, 1
        %s447 = smul.addr %s446, 64
        %s448 = scalar_lea.vmem [#allocation2], %s447
        // Predicated region
        $region73: #{tpu_custom_call.1} parent=71 // pred_check
          %p449 = pneg %p53
        $region74: #{tpu_custom_call.1} parent=71 // pred_check_branch
          %451 = sbr.rel (%p449) target = $region76
        $region75: #{tpu_custom_call.1} parent=71 // pred_region
          %452 = dma.done %s445, 1024
        $region76: #{tpu_custom_call.1} parent=71 // pred_fallthru
          _
        // Predicated region
        $region77: #{tpu_custom_call.1} parent=71 // pred_check
          %p453 = pneg %p74
        $region78: #{tpu_custom_call.1} parent=71 // pred_check_branch
          %455 = sbr.rel (%p453) target = $region80
        $region79: #{tpu_custom_call.1} parent=71 // pred_region
          %456 = dma.done [#allocation6], 2048
        $region80: #{tpu_custom_call.1} parent=71 // pred_fallthru
          _
        // Predicated region
        $region81: #{tpu_custom_call.1} parent=71 // pred_check
          %p457 = pneg %p158
        $region82: #{tpu_custom_call.1} parent=71 // pred_check_branch
          %459 = sbr.rel (%p457) target = $region84
        $region83: #{tpu_custom_call.1} parent=71 // pred_region
          %460 = dma.done [#allocation6], 2048
        $region84: #{tpu_custom_call.1} parent=71 // pred_fallthru
          _
        // Predicated region
        $region85: #{tpu_custom_call.1} parent=71 // pred_check
          %p461 = pneg %p242
        $region86: #{tpu_custom_call.1} parent=71 // pred_check_branch
          %463 = sbr.rel (%p461) target = $region88
        $region87: #{tpu_custom_call.1} parent=71 // pred_region
          %464 = dma.done [#allocation9], 2048
        $region88: #{tpu_custom_call.1} parent=71 // pred_fallthru
          _
        %s465 = sand.u32 %s40, 1
        %s466 = scalar_lea.sflag [#allocation3], %s465
        %s467 = sand.u32 %s40, 1
        %s468 = smul.addr %s467, 64
        %s469 = scalar_lea.vmem [#allocation2], %s468
        %p470 = pneg %p53
        %p471 = pneg %p50
        %p472 = pneg %p74
        %p473 = pneg %p71
        %p474 = pneg %p95
        %p475 = pneg %p92
        %p476 = pneg %p116
        %p477 = pneg %p113
        %p478 = pneg %p137
        %p479 = pneg %p134
        %p480 = pneg %p158
        %p481 = pneg %p155
        %p482 = pneg %p179
        %p483 = pneg %p176
        %p484 = pneg %p200
        %p485 = pneg %p197
        %p486 = pneg %p221
        %p487 = pneg %p218
        %p488 = pneg %p242
        %p489 = pneg %p239
        %p490 = pneg %p263
        %p491 = pneg %p260
        %p492 = pneg %p284
        %p493 = pneg %p281
        %p494 = pneg %p305
        %p495 = pneg %p302
        %p496 = pneg %p331
        %p497 = pneg %p328
        %s498 = sand.u32 %s318, 1
        %s499 = scalar_lea.sflag [#allocation4], %s498
        %s500 = sand.u32 %s318, 1
        %s501 = smul.addr %s500, 64
        %s502 = scalar_lea.vmem [#allocation10], %s501
        %s503 = smul.u32 8, %s32
        %s504 = smul.u32 8, %s32
        %v505 = vld [vmem:[%s448] sm:$0xff]
        %v506 = vld [vmem:[%s448 + $0x8] sm:$0xff]
        %v507 = vld [vmem:[%s448 + $0x10] sm:$0xff]
        %v508 = vld [vmem:[%s448 + $0x18] sm:$0xff]
        %v509 = vld [vmem:[%s448 + $0x20] sm:$0xff]
        %v510 = vld [vmem:[%s448 + $0x28] sm:$0xff]
        %v511 = vld [vmem:[%s448 + $0x30] sm:$0xff]
        %v512 = vld [vmem:[%s448 + $0x38] sm:$0xff]
        %v513 = vld [vmem:[#allocation5] sm:$0xff]
        %v514 = vld [vmem:[#allocation5 + $0x8] sm:$0xff]
        %v515 = vld [vmem:[#allocation5 + $0x10] sm:$0xff]
        %v516 = vld [vmem:[#allocation5 + $0x18] sm:$0xff]
        %v517 = vld [vmem:[#allocation5 + $0x20] sm:$0xff]
        %v518 = vld [vmem:[#allocation5 + $0x28] sm:$0xff]
        %v519 = vld [vmem:[#allocation5 + $0x30] sm:$0xff]
        %v520 = vld [vmem:[#allocation5 + $0x38] sm:$0xff]
        %v521 = vld [vmem:[#allocation5 + $0x40] sm:$0xff]
        %v522 = vld [vmem:[#allocation5 + $0x48] sm:$0xff]
        %v523 = vld [vmem:[#allocation5 + $0x50] sm:$0xff]
        %v524 = vld [vmem:[#allocation5 + $0x58] sm:$0xff]
        %v525 = vld [vmem:[#allocation5 + $0x60] sm:$0xff]
        %v526 = vld [vmem:[#allocation5 + $0x68] sm:$0xff]
        %v527 = vld [vmem:[#allocation5 + $0x70] sm:$0xff]
        %v528 = vld [vmem:[#allocation5 + $0x78] sm:$0xff]
        %v529 = vld [vmem:[%s2] sm:$0x1]
        %v531 = vlaneseq
        %v532 = vshrl.u32 %v531, 7
        %v533 = vsub.s32 0, %v532
        %v534 = vrot.slane %v529, %v533
        %536 = vmatprep.subr.mxu0 0.0
        %537 = vmatpush1.msra.mxu0 %v513
        %538 = vmatprep.subr.mxu0 0.0
        %539 = vmatpush1.msra.mxu0 %v514
        %540 = vmatprep.subr.mxu0 0.0
        %541 = vmatpush1.msra.mxu0 %v515
        %542 = vmatprep.subr.mxu0 0.0
        %543 = vmatpush1.msra.mxu0 %v516
        %544 = vmatprep.subr.mxu0 0.0
        %545 = vmatpush1.msra.mxu0 %v517
        %546 = vmatprep.subr.mxu0 0.0
        %547 = vmatpush1.msra.mxu0 %v518
        %548 = vmatprep.subr.mxu0 0.0
        %549 = vmatpush1.msra.mxu0 %v519
        %550 = vmatprep.subr.mxu0 0.0
        %551 = vmatpush1.msra.mxu0 %v520
        %552 = vmatprep.subr.mxu0 0.0
        %553 = vmatpush1.msra.mxu0 %v521
        %554 = vmatprep.subr.mxu0 0.0
        %555 = vmatpush1.msra.mxu0 %v522
        %556 = vmatprep.subr.mxu0 0.0
        %557 = vmatpush1.msra.mxu0 %v523
        %558 = vmatprep.subr.mxu0 0.0
        %559 = vmatpush1.msra.mxu0 %v524
        %560 = vmatprep.subr.mxu0 0.0
        %561 = vmatpush1.msra.mxu0 %v525
        %562 = vmatprep.subr.mxu0 0.0
        %563 = vmatpush1.msra.mxu0 %v526
        %564 = vmatprep.subr.mxu0 0.0
        %565 = vmatpush1.msra.mxu0 %v527
        %566 = vmatprep.subr.mxu0 0.0
        %567 = vmatpush1.msra.mxu0 %v528
        %568 = vmatprep.subr.mxu0 0.0
        %569 = vmatpush1.msra.mxu0 0.0
        %570 = vmatprep.subr.mxu0 0.0
        %571 = vmatpush1.msra.mxu0 0.0
        %572 = vmatprep.subr.mxu0 0.0
        %573 = vmatpush1.msra.mxu0 0.0
        %574 = vmatprep.subr.mxu0 0.0
        %575 = vmatpush1.msra.mxu0 0.0
        %576 = vmatprep.subr.mxu0 0.0
        %577 = vmatpush1.msra.mxu0 0.0
        %578 = vmatprep.subr.mxu0 0.0
        %579 = vmatpush1.msra.mxu0 0.0
        %580 = vmatprep.subr.mxu0 0.0
        %581 = vmatpush1.msra.mxu0 0.0
        %582 = vmatprep.subr.mxu0 0.0
        %583 = vmatpush1.msra.mxu0 0.0
        %584 = vmatprep.subr.mxu0 0.0
        %585 = vmatpush1.msra.mxu0 0.0
        %586 = vmatprep.subr.mxu0 0.0
        %587 = vmatpush1.msra.mxu0 0.0
        %588 = vmatprep.subr.mxu0 0.0
        %589 = vmatpush1.msra.mxu0 0.0
        %590 = vmatprep.subr.mxu0 0.0
        %591 = vmatpush1.msra.mxu0 0.0
        %592 = vmatprep.subr.mxu0 0.0
        %593 = vmatpush1.msra.mxu0 0.0
        %594 = vmatprep.subr.mxu0 0.0
        %595 = vmatpush1.msra.mxu0 0.0
        %596 = vmatprep.subr.mxu0 0.0
        %597 = vmatpush1.msra.mxu0 0.0
        %598 = vmatprep.subr.mxu0 0.0
        %599 = vmatpush1.msra.mxu0 0.0
        %600 = vmatprep.mubr.f32.mxu0 0.0
        %601 = vmatmul.mubr.f32.gmra.mrb[0].mxu0 %v505
        %v602 = vpop.f32.mrb[0].mxu0
        %v603 = vadd.f32 %v534, %v602
        %v604 = vpop.f32.mrb[0].mxu0
        %605 = vmatprep.mubr.f32.mxu0 0.0
        %606 = vmatmul.mubr.f32.gmra.mrb[0].mxu0 %v506
        %v607 = vpop.f32.mrb[0].mxu0
        %v608 = vadd.f32 %v534, %v607
        %v609 = vpop.f32.mrb[0].mxu0
        %610 = vmatprep.mubr.f32.mxu0 0.0
        %611 = vmatmul.mubr.f32.gmra.mrb[0].mxu0 %v507
        %v612 = vpop.f32.mrb[0].mxu0
        %v613 = vadd.f32 %v534, %v612
        %v614 = vpop.f32.mrb[0].mxu0
        %615 = vmatprep.mubr.f32.mxu0 0.0
        %616 = vmatmul.mubr.f32.gmra.mrb[0].mxu0 %v508
        %v617 = vpop.f32.mrb[0].mxu0
        %v618 = vadd.f32 %v534, %v617
        %v619 = vpop.f32.mrb[0].mxu0
        %620 = vmatprep.mubr.f32.mxu0 0.0
        %621 = vmatmul.mubr.f32.gmra.mrb[0].mxu0 %v509
        %v622 = vpop.f32.mrb[0].mxu0
        %v623 = vadd.f32 %v534, %v622
        %v624 = vpop.f32.mrb[0].mxu0
        %625 = vmatprep.mubr.f32.mxu0 0.0
        %626 = vmatmul.mubr.f32.gmra.mrb[0].mxu0 %v510
        %v627 = vpop.f32.mrb[0].mxu0
        %v628 = vadd.f32 %v534, %v627
        %v629 = vpop.f32.mrb[0].mxu0
        %630 = vmatprep.mubr.f32.mxu0 0.0
        %631 = vmatmul.mubr.f32.gmra.mrb[0].mxu0 %v511
        %v632 = vpop.f32.mrb[0].mxu0
        %v633 = vadd.f32 %v534, %v632
        %v634 = vpop.f32.mrb[0].mxu0
        %635 = vmatprep.mubr.f32.mxu0 0.0
        %636 = vmatmul.mubr.f32.gmra.mrb[0].mxu0 %v512
        %v637 = vpop.f32.mrb[0].mxu0
        %v638 = vadd.f32 %v534, %v637
        %v639 = vpop.f32.mrb[0].mxu0
        %640 = vdwg.mxu0
        %v641 = vmax.f32 %v603, 0.0
        %v642 = vmax.f32 %v608, 0.0
        %v643 = vmax.f32 %v613, 0.0
        %v644 = vmax.f32 %v618, 0.0
        %v645 = vmax.f32 %v623, 0.0
        %v646 = vmax.f32 %v628, 0.0
        %v647 = vmax.f32 %v633, 0.0
        %v648 = vmax.f32 %v638, 0.0
        %649 = vadd.xlane.f32.xlu0 %v641
        %v650 = vpop.xlane.xlu0 %649
        %651 = vadd.xlane.f32.xlu0 %v642
        %v652 = vpop.xlane.xlu0 %651
        %653 = vadd.xlane.f32.xlu0 %v643
        %v654 = vpop.xlane.xlu0 %653
        %655 = vadd.xlane.f32.xlu0 %v644
        %v656 = vpop.xlane.xlu0 %655
        %657 = vadd.xlane.f32.xlu0 %v645
        %v658 = vpop.xlane.xlu0 %657
        %659 = vadd.xlane.f32.xlu0 %v646
        %v660 = vpop.xlane.xlu0 %659
        %661 = vadd.xlane.f32.xlu0 %v647
        %v662 = vpop.xlane.xlu0 %661
        %663 = vadd.xlane.f32.xlu0 %v648
        %v664 = vpop.xlane.xlu0 %663
        %v665 = vmul.f32 %v650, 0.03125
        %v666 = vmul.f32 %v652, 0.03125
        %v667 = vmul.f32 %v654, 0.03125
        %v668 = vmul.f32 %v656, 0.03125
        %v669 = vmul.f32 %v658, 0.03125
        %v670 = vmul.f32 %v660, 0.03125
        %v671 = vmul.f32 %v662, 0.03125
        %v672 = vmul.f32 %v664, 0.03125
        %v673 = vsub.f32 %v641, %v665
        %v674 = vsub.f32 %v642, %v666
        %v675 = vsub.f32 %v643, %v667
        %v676 = vsub.f32 %v644, %v668
        %v677 = vsub.f32 %v645, %v669
        %v678 = vsub.f32 %v646, %v670
        %v679 = vsub.f32 %v647, %v671
        %v680 = vsub.f32 %v648, %v672
        %v681 = vmul.f32 %v673, %v673
        %v682 = vmul.f32 %v674, %v674
        %v683 = vmul.f32 %v675, %v675
        %v684 = vmul.f32 %v676, %v676
        %v685 = vmul.f32 %v677, %v677
        %v686 = vmul.f32 %v678, %v678
        %v687 = vmul.f32 %v679, %v679
        %v688 = vmul.f32 %v680, %v680
        %689 = vadd.xlane.f32.xlu0 %v681
        %v690 = vpop.xlane.xlu0 %689
        %691 = vadd.xlane.f32.xlu0 %v682
        %v692 = vpop.xlane.xlu0 %691
        %693 = vadd.xlane.f32.xlu0 %v683
        %v694 = vpop.xlane.xlu0 %693
        %695 = vadd.xlane.f32.xlu0 %v684
        %v696 = vpop.xlane.xlu0 %695
        %697 = vadd.xlane.f32.xlu0 %v685
        %v698 = vpop.xlane.xlu0 %697
        %699 = vadd.xlane.f32.xlu0 %v686
        %v700 = vpop.xlane.xlu0 %699
        %701 = vadd.xlane.f32.xlu0 %v687
        %v702 = vpop.xlane.xlu0 %701
        %703 = vadd.xlane.f32.xlu0 %v688
        %v704 = vpop.xlane.xlu0 %703
        %v705 = vmul.f32 %v665, %v665
        %v706 = vmul.f32 %v666, %v666
        %v707 = vmul.f32 %v667, %v667
        %v708 = vmul.f32 %v668, %v668
        %v709 = vmul.f32 %v669, %v669
        %v710 = vmul.f32 %v670, %v670
        %v711 = vmul.f32 %v671, %v671
        %v712 = vmul.f32 %v672, %v672
        %v713 = vmul.f32 %v705, 96.0
        %v714 = vmul.f32 %v706, 96.0
        %v715 = vmul.f32 %v707, 96.0
        %v716 = vmul.f32 %v708, 96.0
        %v717 = vmul.f32 %v709, 96.0
        %v718 = vmul.f32 %v710, 96.0
        %v719 = vmul.f32 %v711, 96.0
        %v720 = vmul.f32 %v712, 96.0
        %v721 = vsub.f32 %v690, %v713
        %v722 = vsub.f32 %v692, %v714
        %v723 = vsub.f32 %v694, %v715
        %v724 = vsub.f32 %v696, %v716
        %v725 = vsub.f32 %v698, %v717
        %v726 = vsub.f32 %v700, %v718
        %v727 = vsub.f32 %v702, %v719
        %v728 = vsub.f32 %v704, %v720
        %v729 = vmul.f32 %v721, 0.03125
        %v730 = vmul.f32 %v722, 0.03125
        %v731 = vmul.f32 %v723, 0.03125
        %v732 = vmul.f32 %v724, 0.03125
        %v733 = vmul.f32 %v725, 0.03125
        %v734 = vmul.f32 %v726, 0.03125
        %v735 = vmul.f32 %v727, 0.03125
        %v736 = vmul.f32 %v728, 0.03125
        %v737 = vmax.f32 %v729, 0.0
        %v738 = vmax.f32 %v730, 0.0
        %v739 = vmax.f32 %v731, 0.0
        %v740 = vmax.f32 %v732, 0.0
        %v741 = vmax.f32 %v733, 0.0
        %v742 = vmax.f32 %v734, 0.0
        %v743 = vmax.f32 %v735, 0.0
        %v744 = vmax.f32 %v736, 0.0
        %v745 = vadd.f32 %v737, 1e-05
        %v746 = vadd.f32 %v738, 1e-05
        %v747 = vadd.f32 %v739, 1e-05
        %v748 = vadd.f32 %v740, 1e-05
        %v749 = vadd.f32 %v741, 1e-05
        %v750 = vadd.f32 %v742, 1e-05
        %v751 = vadd.f32 %v743, 1e-05
        %v752 = vadd.f32 %v744, 1e-05
        %v753 = vrsqrt.pop %v745
        %v754 = vrsqrt.pop %v746
        %v755 = vrsqrt.pop %v747
        %v756 = vrsqrt.pop %v748
        %v757 = vrsqrt.pop %v749
        %v758 = vrsqrt.pop %v750
        %v759 = vrsqrt.pop %v751
        %v760 = vrsqrt.pop %v752
        %v761 = vmul.f32 %v673, %v753
        %v762 = vmul.f32 %v674, %v754
        %v763 = vmul.f32 %v675, %v755
        %v764 = vmul.f32 %v676, %v756
        %v765 = vmul.f32 %v677, %v757
        %v766 = vmul.f32 %v678, %v758
        %v767 = vmul.f32 %v679, %v759
        %v768 = vmul.f32 %v680, %v760
        %v769 = vld [vmem:[%s3] sm:$0x1]
        %v771 = vlaneseq
        %v772 = vshrl.u32 %v771, 7
        %v773 = vsub.s32 0, %v772
        %v774 = vrot.slane %v769, %v773
        %v776 = vmul.f32 %v761, %v774
        %v777 = vmul.f32 %v762, %v774
        %v778 = vmul.f32 %v763, %v774
        %v779 = vmul.f32 %v764, %v774
        %v780 = vmul.f32 %v765, %v774
        %v781 = vmul.f32 %v766, %v774
        %v782 = vmul.f32 %v767, %v774
        %v783 = vmul.f32 %v768, %v774
        %v784 = vld [vmem:[%s4] sm:$0x1]
        %v786 = vlaneseq
        %v787 = vshrl.u32 %v786, 7
        %v788 = vsub.s32 0, %v787
        %v789 = vrot.slane %v784, %v788
        %v791 = vadd.f32 %v776, %v789
        %v792 = vadd.f32 %v777, %v789
        %v793 = vadd.f32 %v778, %v789
        %v794 = vadd.f32 %v779, %v789
        %v795 = vadd.f32 %v780, %v789
        %v796 = vadd.f32 %v781, %v789
        %v797 = vadd.f32 %v782, %v789
        %v798 = vadd.f32 %v783, %v789
        %v799 = vld [vmem:[#allocation7] sm:$0xff]
        %v800 = vld [vmem:[#allocation7 + $0x8] sm:$0xff]
        %v801 = vld [vmem:[#allocation7 + $0x10] sm:$0xff]
        %v802 = vld [vmem:[#allocation7 + $0x18] sm:$0xff]
        %v803 = vld [vmem:[#allocation7 + $0x20] sm:$0xff]
        %v804 = vld [vmem:[#allocation7 + $0x28] sm:$0xff]
        %v805 = vld [vmem:[#allocation7 + $0x30] sm:$0xff]
        %v806 = vld [vmem:[#allocation7 + $0x38] sm:$0xff]
        %v807 = vld [vmem:[#allocation7 + $0x40] sm:$0xff]
        %v808 = vld [vmem:[#allocation7 + $0x48] sm:$0xff]
        %v809 = vld [vmem:[#allocation7 + $0x50] sm:$0xff]
        %v810 = vld [vmem:[#allocation7 + $0x58] sm:$0xff]
        %v811 = vld [vmem:[#allocation7 + $0x60] sm:$0xff]
        %v812 = vld [vmem:[#allocation7 + $0x68] sm:$0xff]
        %v813 = vld [vmem:[#allocation7 + $0x70] sm:$0xff]
        %v814 = vld [vmem:[#allocation7 + $0x78] sm:$0xff]
        %v815 = vld [vmem:[%s6] sm:$0x1]
        %v817 = vlaneseq
        %v818 = vshrl.u32 %v817, 7
        %v819 = vsub.s32 0, %v818
        %v820 = vrot.slane %v815, %v819
        %822 = vmatprep.subr.mxu0 0.0
        %823 = vmatpush1.msra.mxu0 %v799
        %824 = vmatprep.subr.mxu0 0.0
        %825 = vmatpush1.msra.mxu0 %v800
        %826 = vmatprep.subr.mxu0 0.0
        %827 = vmatpush1.msra.mxu0 %v801
        %828 = vmatprep.subr.mxu0 0.0
        %829 = vmatpush1.msra.mxu0 %v802
        %830 = vmatprep.subr.mxu0 0.0
        %831 = vmatpush1.msra.mxu0 %v803
        %832 = vmatprep.subr.mxu0 0.0
        %833 = vmatpush1.msra.mxu0 %v804
        %834 = vmatprep.subr.mxu0 0.0
        %835 = vmatpush1.msra.mxu0 %v805
        %836 = vmatprep.subr.mxu0 0.0
        %837 = vmatpush1.msra.mxu0 %v806
        %838 = vmatprep.subr.mxu0 0.0
        %839 = vmatpush1.msra.mxu0 %v807
        %840 = vmatprep.subr.mxu0 0.0
        %841 = vmatpush1.msra.mxu0 %v808
        %842 = vmatprep.subr.mxu0 0.0
        %843 = vmatpush1.msra.mxu0 %v809
        %844 = vmatprep.subr.mxu0 0.0
        %845 = vmatpush1.msra.mxu0 %v810
        %846 = vmatprep.subr.mxu0 0.0
        %847 = vmatpush1.msra.mxu0 %v811
        %848 = vmatprep.subr.mxu0 0.0
        %849 = vmatpush1.msra.mxu0 %v812
        %850 = vmatprep.subr.mxu0 0.0
        %851 = vmatpush1.msra.mxu0 %v813
        %852 = vmatprep.subr.mxu0 0.0
        %853 = vmatpush1.msra.mxu0 %v814
        %854 = vmatprep.subr.mxu0 0.0
        %855 = vmatpush1.msra.mxu0 0.0
        %856 = vmatprep.subr.mxu0 0.0
        %857 = vmatpush1.msra.mxu0 0.0
        %858 = vmatprep.subr.mxu0 0.0
        %859 = vmatpush1.msra.mxu0 0.0
        %860 = vmatprep.subr.mxu0 0.0
        %861 = vmatpush1.msra.mxu0 0.0
        %862 = vmatprep.subr.mxu0 0.0
        %863 = vmatpush1.msra.mxu0 0.0
        %864 = vmatprep.subr.mxu0 0.0
        %865 = vmatpush1.msra.mxu0 0.0
        %866 = vmatprep.subr.mxu0 0.0
        %867 = vmatpush1.msra.mxu0 0.0
        %868 = vmatprep.subr.mxu0 0.0
        %869 = vmatpush1.msra.mxu0 0.0
        %870 = vmatprep.subr.mxu0 0.0
        %871 = vmatpush1.msra.mxu0 0.0
        %872 = vmatprep.subr.mxu0 0.0
        %873 = vmatpush1.msra.mxu0 0.0
        %874 = vmatprep.subr.mxu0 0.0
        %875 = vmatpush1.msra.mxu0 0.0
        %876 = vmatprep.subr.mxu0 0.0
        %877 = vmatpush1.msra.mxu0 0.0
        %878 = vmatprep.subr.mxu0 0.0
        %879 = vmatpush1.msra.mxu0 0.0
        %880 = vmatprep.subr.mxu0 0.0
        %881 = vmatpush1.msra.mxu0 0.0
        %882 = vmatprep.subr.mxu0 0.0
        %883 = vmatpush1.msra.mxu0 0.0
        %884 = vmatprep.subr.mxu0 0.0
        %885 = vmatpush1.msra.mxu0 0.0
        %886 = vmatprep.mubr.f32.mxu0 0.0
        %887 = vmatmul.mubr.f32.gmra.mrb[0].mxu0 %v791
        %v888 = vpop.f32.mrb[0].mxu0
        %v889 = vadd.f32 %v820, %v888
        %v890 = vpop.f32.mrb[0].mxu0
        %891 = vmatprep.mubr.f32.mxu0 0.0
        %892 = vmatmul.mubr.f32.gmra.mrb[0].mxu0 %v792
        %v893 = vpop.f32.mrb[0].mxu0
        %v894 = vadd.f32 %v820, %v893
        %v895 = vpop.f32.mrb[0].mxu0
        %896 = vmatprep.mubr.f32.mxu0 0.0
        %897 = vmatmul.mubr.f32.gmra.mrb[0].mxu0 %v793
        %v898 = vpop.f32.mrb[0].mxu0
        %v899 = vadd.f32 %v820, %v898
        %v900 = vpop.f32.mrb[0].mxu0
        %901 = vmatprep.mubr.f32.mxu0 0.0
        %902 = vmatmul.mubr.f32.gmra.mrb[0].mxu0 %v794
        %v903 = vpop.f32.mrb[0].mxu0
        %v904 = vadd.f32 %v820, %v903
        %v905 = vpop.f32.mrb[0].mxu0
        %906 = vmatprep.mubr.f32.mxu0 0.0
        %907 = vmatmul.mubr.f32.gmra.mrb[0].mxu0 %v795
        %v908 = vpop.f32.mrb[0].mxu0
        %v909 = vadd.f32 %v820, %v908
        %v910 = vpop.f32.mrb[0].mxu0
        %911 = vmatprep.mubr.f32.mxu0 0.0
        %912 = vmatmul.mubr.f32.gmra.mrb[0].mxu0 %v796
        %v913 = vpop.f32.mrb[0].mxu0
        %v914 = vadd.f32 %v820, %v913
        %v915 = vpop.f32.mrb[0].mxu0
        %916 = vmatprep.mubr.f32.mxu0 0.0
        %917 = vmatmul.mubr.f32.gmra.mrb[0].mxu0 %v797
        %v918 = vpop.f32.mrb[0].mxu0
        %v919 = vadd.f32 %v820, %v918
        %v920 = vpop.f32.mrb[0].mxu0
        %921 = vmatprep.mubr.f32.mxu0 0.0
        %922 = vmatmul.mubr.f32.gmra.mrb[0].mxu0 %v798
        %v923 = vpop.f32.mrb[0].mxu0
        %v924 = vadd.f32 %v820, %v923
        %v925 = vpop.f32.mrb[0].mxu0
        %926 = vdwg.mxu0
        %v927 = vmax.f32 %v889, 0.0
        %v928 = vmax.f32 %v894, 0.0
        %v929 = vmax.f32 %v899, 0.0
        %v930 = vmax.f32 %v904, 0.0
        %v931 = vmax.f32 %v909, 0.0
        %v932 = vmax.f32 %v914, 0.0
        %v933 = vmax.f32 %v919, 0.0
        %v934 = vmax.f32 %v924, 0.0
        %935 = vadd.xlane.f32.xlu0 %v927
        %v936 = vpop.xlane.xlu0 %935
        %937 = vadd.xlane.f32.xlu0 %v928
        %v938 = vpop.xlane.xlu0 %937
        %939 = vadd.xlane.f32.xlu0 %v929
        %v940 = vpop.xlane.xlu0 %939
        %941 = vadd.xlane.f32.xlu0 %v930
        %v942 = vpop.xlane.xlu0 %941
        %943 = vadd.xlane.f32.xlu0 %v931
        %v944 = vpop.xlane.xlu0 %943
        %945 = vadd.xlane.f32.xlu0 %v932
        %v946 = vpop.xlane.xlu0 %945
        %947 = vadd.xlane.f32.xlu0 %v933
        %v948 = vpop.xlane.xlu0 %947
        %949 = vadd.xlane.f32.xlu0 %v934
        %v950 = vpop.xlane.xlu0 %949
        %v951 = vmul.f32 %v936, 0.03125
        %v952 = vmul.f32 %v938, 0.03125
        %v953 = vmul.f32 %v940, 0.03125
        %v954 = vmul.f32 %v942, 0.03125
        %v955 = vmul.f32 %v944, 0.03125
        %v956 = vmul.f32 %v946, 0.03125
        %v957 = vmul.f32 %v948, 0.03125
        %v958 = vmul.f32 %v950, 0.03125
        %v959 = vsub.f32 %v927, %v951
        %v960 = vsub.f32 %v928, %v952
        %v961 = vsub.f32 %v929, %v953
        %v962 = vsub.f32 %v930, %v954
        %v963 = vsub.f32 %v931, %v955
        %v964 = vsub.f32 %v932, %v956
        %v965 = vsub.f32 %v933, %v957
        %v966 = vsub.f32 %v934, %v958
        %v967 = vmul.f32 %v959, %v959
        %v968 = vmul.f32 %v960, %v960
        %v969 = vmul.f32 %v961, %v961
        %v970 = vmul.f32 %v962, %v962
        %v971 = vmul.f32 %v963, %v963
        %v972 = vmul.f32 %v964, %v964
        %v973 = vmul.f32 %v965, %v965
        %v974 = vmul.f32 %v966, %v966
        %975 = vadd.xlane.f32.xlu0 %v967
        %v976 = vpop.xlane.xlu0 %975
        %977 = vadd.xlane.f32.xlu0 %v968
        %v978 = vpop.xlane.xlu0 %977
        %979 = vadd.xlane.f32.xlu0 %v969
        %v980 = vpop.xlane.xlu0 %979
        %981 = vadd.xlane.f32.xlu0 %v970
        %v982 = vpop.xlane.xlu0 %981
        %983 = vadd.xlane.f32.xlu0 %v971
        %v984 = vpop.xlane.xlu0 %983
        %985 = vadd.xlane.f32.xlu0 %v972
        %v986 = vpop.xlane.xlu0 %985
        %987 = vadd.xlane.f32.xlu0 %v973
        %v988 = vpop.xlane.xlu0 %987
        %989 = vadd.xlane.f32.xlu0 %v974
        %v990 = vpop.xlane.xlu0 %989
        %v991 = vmul.f32 %v951, %v951
        %v992 = vmul.f32 %v952, %v952
        %v993 = vmul.f32 %v953, %v953
        %v994 = vmul.f32 %v954, %v954
        %v995 = vmul.f32 %v955, %v955
        %v996 = vmul.f32 %v956, %v956
        %v997 = vmul.f32 %v957, %v957
        %v998 = vmul.f32 %v958, %v958
        %v999 = vmul.f32 %v991, 96.0
        %v1000 = vmul.f32 %v992, 96.0
        %v1001 = vmul.f32 %v993, 96.0
        %v1002 = vmul.f32 %v994, 96.0
        %v1003 = vmul.f32 %v995, 96.0
        %v1004 = vmul.f32 %v996, 96.0
        %v1005 = vmul.f32 %v997, 96.0
        %v1006 = vmul.f32 %v998, 96.0
        %v1007 = vsub.f32 %v976, %v999
        %v1008 = vsub.f32 %v978, %v1000
        %v1009 = vsub.f32 %v980, %v1001
        %v1010 = vsub.f32 %v982, %v1002
        %v1011 = vsub.f32 %v984, %v1003
        %v1012 = vsub.f32 %v986, %v1004
        %v1013 = vsub.f32 %v988, %v1005
        %v1014 = vsub.f32 %v990, %v1006
        %v1015 = vmul.f32 %v1007, 0.03125
        %v1016 = vmul.f32 %v1008, 0.03125
        %v1017 = vmul.f32 %v1009, 0.03125
        %v1018 = vmul.f32 %v1010, 0.03125
        %v1019 = vmul.f32 %v1011, 0.03125
        %v1020 = vmul.f32 %v1012, 0.03125
        %v1021 = vmul.f32 %v1013, 0.03125
        %v1022 = vmul.f32 %v1014, 0.03125
        %v1023 = vmax.f32 %v1015, 0.0
        %v1024 = vmax.f32 %v1016, 0.0
        %v1025 = vmax.f32 %v1017, 0.0
        %v1026 = vmax.f32 %v1018, 0.0
        %v1027 = vmax.f32 %v1019, 0.0
        %v1028 = vmax.f32 %v1020, 0.0
        %v1029 = vmax.f32 %v1021, 0.0
        %v1030 = vmax.f32 %v1022, 0.0
        %v1031 = vadd.f32 %v1023, 1e-05
        %v1032 = vadd.f32 %v1024, 1e-05
        %v1033 = vadd.f32 %v1025, 1e-05
        %v1034 = vadd.f32 %v1026, 1e-05
        %v1035 = vadd.f32 %v1027, 1e-05
        %v1036 = vadd.f32 %v1028, 1e-05
        %v1037 = vadd.f32 %v1029, 1e-05
        %v1038 = vadd.f32 %v1030, 1e-05
        %v1039 = vrsqrt.pop %v1031
        %v1040 = vrsqrt.pop %v1032
        %v1041 = vrsqrt.pop %v1033
        %v1042 = vrsqrt.pop %v1034
        %v1043 = vrsqrt.pop %v1035
        %v1044 = vrsqrt.pop %v1036
        %v1045 = vrsqrt.pop %v1037
        %v1046 = vrsqrt.pop %v1038
        %v1047 = vmul.f32 %v959, %v1039
        %v1048 = vmul.f32 %v960, %v1040
        %v1049 = vmul.f32 %v961, %v1041
        %v1050 = vmul.f32 %v962, %v1042
        %v1051 = vmul.f32 %v963, %v1043
        %v1052 = vmul.f32 %v964, %v1044
        %v1053 = vmul.f32 %v965, %v1045
        %v1054 = vmul.f32 %v966, %v1046
        %v1055 = vld [vmem:[%s7] sm:$0x1]
        %v1057 = vlaneseq
        %v1058 = vshrl.u32 %v1057, 7
        %v1059 = vsub.s32 0, %v1058
        %v1060 = vrot.slane %v1055, %v1059
        %v1062 = vmul.f32 %v1047, %v1060
        %v1063 = vmul.f32 %v1048, %v1060
        %v1064 = vmul.f32 %v1049, %v1060
        %v1065 = vmul.f32 %v1050, %v1060
        %v1066 = vmul.f32 %v1051, %v1060
        %v1067 = vmul.f32 %v1052, %v1060
        %v1068 = vmul.f32 %v1053, %v1060
        %v1069 = vmul.f32 %v1054, %v1060
        %v1070 = vld [vmem:[%s8] sm:$0x1]
        %v1072 = vlaneseq
        %v1073 = vshrl.u32 %v1072, 7
        %v1074 = vsub.s32 0, %v1073
        %v1075 = vrot.slane %v1070, %v1074
        %v1077 = vadd.f32 %v1062, %v1075
        %v1078 = vadd.f32 %v1063, %v1075
        %v1079 = vadd.f32 %v1064, %v1075
        %v1080 = vadd.f32 %v1065, %v1075
        %v1081 = vadd.f32 %v1066, %v1075
        %v1082 = vadd.f32 %v1067, %v1075
        %v1083 = vadd.f32 %v1068, %v1075
        %v1084 = vadd.f32 %v1069, %v1075
        %v1085 = vld [vmem:[#allocation8] sm:$0xff]
        %v1086 = vld [vmem:[#allocation8 + $0x8] sm:$0xff]
        %v1087 = vld [vmem:[#allocation8 + $0x10] sm:$0xff]
        %v1088 = vld [vmem:[#allocation8 + $0x18] sm:$0xff]
        %v1089 = vld [vmem:[#allocation8 + $0x20] sm:$0xff]
        %v1090 = vld [vmem:[#allocation8 + $0x28] sm:$0xff]
        %v1091 = vld [vmem:[#allocation8 + $0x30] sm:$0xff]
        %v1092 = vld [vmem:[#allocation8 + $0x38] sm:$0xff]
        %v1093 = vld [vmem:[#allocation8 + $0x40] sm:$0xff]
        %v1094 = vld [vmem:[#allocation8 + $0x48] sm:$0xff]
        %v1095 = vld [vmem:[#allocation8 + $0x50] sm:$0xff]
        %v1096 = vld [vmem:[#allocation8 + $0x58] sm:$0xff]
        %v1097 = vld [vmem:[#allocation8 + $0x60] sm:$0xff]
        %v1098 = vld [vmem:[#allocation8 + $0x68] sm:$0xff]
        %v1099 = vld [vmem:[#allocation8 + $0x70] sm:$0xff]
        %v1100 = vld [vmem:[#allocation8 + $0x78] sm:$0xff]
        %v1101 = vld [vmem:[%s10] sm:$0x1]
        %v1103 = vlaneseq
        %v1104 = vshrl.u32 %v1103, 7
        %v1105 = vsub.s32 0, %v1104
        %v1106 = vrot.slane %v1101, %v1105
        %1108 = vmatprep.subr.mxu0 0.0
        %1109 = vmatpush1.msra.mxu0 %v1085
        %1110 = vmatprep.subr.mxu0 0.0
        %1111 = vmatpush1.msra.mxu0 %v1086
        %1112 = vmatprep.subr.mxu0 0.0
        %1113 = vmatpush1.msra.mxu0 %v1087
        %1114 = vmatprep.subr.mxu0 0.0
        %1115 = vmatpush1.msra.mxu0 %v1088
        %1116 = vmatprep.subr.mxu0 0.0
        %1117 = vmatpush1.msra.mxu0 %v1089
        %1118 = vmatprep.subr.mxu0 0.0
        %1119 = vmatpush1.msra.mxu0 %v1090
        %1120 = vmatprep.subr.mxu0 0.0
        %1121 = vmatpush1.msra.mxu0 %v1091
        %1122 = vmatprep.subr.mxu0 0.0
        %1123 = vmatpush1.msra.mxu0 %v1092
        %1124 = vmatprep.subr.mxu0 0.0
        %1125 = vmatpush1.msra.mxu0 %v1093
        %1126 = vmatprep.subr.mxu0 0.0
        %1127 = vmatpush1.msra.mxu0 %v1094
        %1128 = vmatprep.subr.mxu0 0.0
        %1129 = vmatpush1.msra.mxu0 %v1095
        %1130 = vmatprep.subr.mxu0 0.0
        %1131 = vmatpush1.msra.mxu0 %v1096
        %1132 = vmatprep.subr.mxu0 0.0
        %1133 = vmatpush1.msra.mxu0 %v1097
        %1134 = vmatprep.subr.mxu0 0.0
        %1135 = vmatpush1.msra.mxu0 %v1098
        %1136 = vmatprep.subr.mxu0 0.0
        %1137 = vmatpush1.msra.mxu0 %v1099
        %1138 = vmatprep.subr.mxu0 0.0
        %1139 = vmatpush1.msra.mxu0 %v1100
        %1140 = vmatprep.subr.mxu0 0.0
        %1141 = vmatpush1.msra.mxu0 0.0
        %1142 = vmatprep.subr.mxu0 0.0
        %1143 = vmatpush1.msra.mxu0 0.0
        %1144 = vmatprep.subr.mxu0 0.0
        %1145 = vmatpush1.msra.mxu0 0.0
        %1146 = vmatprep.subr.mxu0 0.0
        %1147 = vmatpush1.msra.mxu0 0.0
        %1148 = vmatprep.subr.mxu0 0.0
        %1149 = vmatpush1.msra.mxu0 0.0
        %1150 = vmatprep.subr.mxu0 0.0
        %1151 = vmatpush1.msra.mxu0 0.0
        %1152 = vmatprep.subr.mxu0 0.0
        %1153 = vmatpush1.msra.mxu0 0.0
        %1154 = vmatprep.subr.mxu0 0.0
        %1155 = vmatpush1.msra.mxu0 0.0
        %1156 = vmatprep.subr.mxu0 0.0
        %1157 = vmatpush1.msra.mxu0 0.0
        %1158 = vmatprep.subr.mxu0 0.0
        %1159 = vmatpush1.msra.mxu0 0.0
        %1160 = vmatprep.subr.mxu0 0.0
        %1161 = vmatpush1.msra.mxu0 0.0
        %1162 = vmatprep.subr.mxu0 0.0
        %1163 = vmatpush1.msra.mxu0 0.0
        %1164 = vmatprep.subr.mxu0 0.0
        %1165 = vmatpush1.msra.mxu0 0.0
        %1166 = vmatprep.subr.mxu0 0.0
        %1167 = vmatpush1.msra.mxu0 0.0
        %1168 = vmatprep.subr.mxu0 0.0
        %1169 = vmatpush1.msra.mxu0 0.0
        %1170 = vmatprep.subr.mxu0 0.0
        %1171 = vmatpush1.msra.mxu0 0.0
        %1172 = vmatprep.mubr.f32.mxu0 0.0
        %1173 = vmatmul.mubr.f32.gmra.mrb[0].mxu0 %v1077
        %v1174 = vpop.f32.mrb[0].mxu0
        %v1175 = vadd.f32 %v1106, %v1174
        %v1176 = vpop.f32.mrb[0].mxu0
        %1177 = vmatprep.mubr.f32.mxu0 0.0
        %1178 = vmatmul.mubr.f32.gmra.mrb[0].mxu0 %v1078
        %v1179 = vpop.f32.mrb[0].mxu0
        %v1180 = vadd.f32 %v1106, %v1179
        %v1181 = vpop.f32.mrb[0].mxu0
        %1182 = vmatprep.mubr.f32.mxu0 0.0
        %1183 = vmatmul.mubr.f32.gmra.mrb[0].mxu0 %v1079
        %v1184 = vpop.f32.mrb[0].mxu0
        %v1185 = vadd.f32 %v1106, %v1184
        %v1186 = vpop.f32.mrb[0].mxu0
        %1187 = vmatprep.mubr.f32.mxu0 0.0
        %1188 = vmatmul.mubr.f32.gmra.mrb[0].mxu0 %v1080
        %v1189 = vpop.f32.mrb[0].mxu0
        %v1190 = vadd.f32 %v1106, %v1189
        %v1191 = vpop.f32.mrb[0].mxu0
        %1192 = vmatprep.mubr.f32.mxu0 0.0
        %1193 = vmatmul.mubr.f32.gmra.mrb[0].mxu0 %v1081
        %v1194 = vpop.f32.mrb[0].mxu0
        %v1195 = vadd.f32 %v1106, %v1194
        %v1196 = vpop.f32.mrb[0].mxu0
        %1197 = vmatprep.mubr.f32.mxu0 0.0
        %1198 = vmatmul.mubr.f32.gmra.mrb[0].mxu0 %v1082
        %v1199 = vpop.f32.mrb[0].mxu0
        %v1200 = vadd.f32 %v1106, %v1199
        %v1201 = vpop.f32.mrb[0].mxu0
        %1202 = vmatprep.mubr.f32.mxu0 0.0
        %1203 = vmatmul.mubr.f32.gmra.mrb[0].mxu0 %v1083
        %v1204 = vpop.f32.mrb[0].mxu0
        %v1205 = vadd.f32 %v1106, %v1204
        %v1206 = vpop.f32.mrb[0].mxu0
        %1207 = vmatprep.mubr.f32.mxu0 0.0
        %1208 = vmatmul.mubr.f32.gmra.mrb[0].mxu0 %v1084
        %v1209 = vpop.f32.mrb[0].mxu0
        %v1210 = vadd.f32 %v1106, %v1209
        %v1211 = vpop.f32.mrb[0].mxu0
        %1212 = vdwg.mxu0
        %v1213 = vmax.f32 %v1175, 0.0
        %v1214 = vmax.f32 %v1180, 0.0
        %v1215 = vmax.f32 %v1185, 0.0
        %v1216 = vmax.f32 %v1190, 0.0
        %v1217 = vmax.f32 %v1195, 0.0
        %v1218 = vmax.f32 %v1200, 0.0
        %v1219 = vmax.f32 %v1205, 0.0
        %v1220 = vmax.f32 %v1210, 0.0
        %1221 = vadd.xlane.f32.xlu0 %v1213
        %v1222 = vpop.xlane.xlu0 %1221
        %1223 = vadd.xlane.f32.xlu0 %v1214
        %v1224 = vpop.xlane.xlu0 %1223
        %1225 = vadd.xlane.f32.xlu0 %v1215
        %v1226 = vpop.xlane.xlu0 %1225
        %1227 = vadd.xlane.f32.xlu0 %v1216
        %v1228 = vpop.xlane.xlu0 %1227
        %1229 = vadd.xlane.f32.xlu0 %v1217
        %v1230 = vpop.xlane.xlu0 %1229
        %1231 = vadd.xlane.f32.xlu0 %v1218
        %v1232 = vpop.xlane.xlu0 %1231
        %1233 = vadd.xlane.f32.xlu0 %v1219
        %v1234 = vpop.xlane.xlu0 %1233
        %1235 = vadd.xlane.f32.xlu0 %v1220
        %v1236 = vpop.xlane.xlu0 %1235
        %v1237 = vmul.f32 %v1222, 0.03125
        %v1238 = vmul.f32 %v1224, 0.03125
        %v1239 = vmul.f32 %v1226, 0.03125
        %v1240 = vmul.f32 %v1228, 0.03125
        %v1241 = vmul.f32 %v1230, 0.03125
        %v1242 = vmul.f32 %v1232, 0.03125
        %v1243 = vmul.f32 %v1234, 0.03125
        %v1244 = vmul.f32 %v1236, 0.03125
        %v1245 = vsub.f32 %v1213, %v1237
        %v1246 = vsub.f32 %v1214, %v1238
        %v1247 = vsub.f32 %v1215, %v1239
        %v1248 = vsub.f32 %v1216, %v1240
        %v1249 = vsub.f32 %v1217, %v1241
        %v1250 = vsub.f32 %v1218, %v1242
        %v1251 = vsub.f32 %v1219, %v1243
        %v1252 = vsub.f32 %v1220, %v1244
        %v1253 = vmul.f32 %v1245, %v1245
        %v1254 = vmul.f32 %v1246, %v1246
        %v1255 = vmul.f32 %v1247, %v1247
        %v1256 = vmul.f32 %v1248, %v1248
        %v1257 = vmul.f32 %v1249, %v1249
        %v1258 = vmul.f32 %v1250, %v1250
        %v1259 = vmul.f32 %v1251, %v1251
        %v1260 = vmul.f32 %v1252, %v1252
        %1261 = vadd.xlane.f32.xlu0 %v1253
        %v1262 = vpop.xlane.xlu0 %1261
        %1263 = vadd.xlane.f32.xlu0 %v1254
        %v1264 = vpop.xlane.xlu0 %1263
        %1265 = vadd.xlane.f32.xlu0 %v1255
        %v1266 = vpop.xlane.xlu0 %1265
        %1267 = vadd.xlane.f32.xlu0 %v1256
        %v1268 = vpop.xlane.xlu0 %1267
        %1269 = vadd.xlane.f32.xlu0 %v1257
        %v1270 = vpop.xlane.xlu0 %1269
        %1271 = vadd.xlane.f32.xlu0 %v1258
        %v1272 = vpop.xlane.xlu0 %1271
        %1273 = vadd.xlane.f32.xlu0 %v1259
        %v1274 = vpop.xlane.xlu0 %1273
        %1275 = vadd.xlane.f32.xlu0 %v1260
        %v1276 = vpop.xlane.xlu0 %1275
        %v1277 = vmul.f32 %v1237, %v1237
        %v1278 = vmul.f32 %v1238, %v1238
        %v1279 = vmul.f32 %v1239, %v1239
        %v1280 = vmul.f32 %v1240, %v1240
        %v1281 = vmul.f32 %v1241, %v1241
        %v1282 = vmul.f32 %v1242, %v1242
        %v1283 = vmul.f32 %v1243, %v1243
        %v1284 = vmul.f32 %v1244, %v1244
        %v1285 = vmul.f32 %v1277, 96.0
        %v1286 = vmul.f32 %v1278, 96.0
        %v1287 = vmul.f32 %v1279, 96.0
        %v1288 = vmul.f32 %v1280, 96.0
        %v1289 = vmul.f32 %v1281, 96.0
        %v1290 = vmul.f32 %v1282, 96.0
        %v1291 = vmul.f32 %v1283, 96.0
        %v1292 = vmul.f32 %v1284, 96.0
        %v1293 = vsub.f32 %v1262, %v1285
        %v1294 = vsub.f32 %v1264, %v1286
        %v1295 = vsub.f32 %v1266, %v1287
        %v1296 = vsub.f32 %v1268, %v1288
        %v1297 = vsub.f32 %v1270, %v1289
        %v1298 = vsub.f32 %v1272, %v1290
        %v1299 = vsub.f32 %v1274, %v1291
        %v1300 = vsub.f32 %v1276, %v1292
        %v1301 = vmul.f32 %v1293, 0.03125
        %v1302 = vmul.f32 %v1294, 0.03125
        %v1303 = vmul.f32 %v1295, 0.03125
        %v1304 = vmul.f32 %v1296, 0.03125
        %v1305 = vmul.f32 %v1297, 0.03125
        %v1306 = vmul.f32 %v1298, 0.03125
        %v1307 = vmul.f32 %v1299, 0.03125
        %v1308 = vmul.f32 %v1300, 0.03125
        %v1309 = vmax.f32 %v1301, 0.0
        %v1310 = vmax.f32 %v1302, 0.0
        %v1311 = vmax.f32 %v1303, 0.0
        %v1312 = vmax.f32 %v1304, 0.0
        %v1313 = vmax.f32 %v1305, 0.0
        %v1314 = vmax.f32 %v1306, 0.0
        %v1315 = vmax.f32 %v1307, 0.0
        %v1316 = vmax.f32 %v1308, 0.0
        %v1317 = vadd.f32 %v1309, 1e-05
        %v1318 = vadd.f32 %v1310, 1e-05
        %v1319 = vadd.f32 %v1311, 1e-05
        %v1320 = vadd.f32 %v1312, 1e-05
        %v1321 = vadd.f32 %v1313, 1e-05
        %v1322 = vadd.f32 %v1314, 1e-05
        %v1323 = vadd.f32 %v1315, 1e-05
        %v1324 = vadd.f32 %v1316, 1e-05
        %v1325 = vrsqrt.pop %v1317
        %v1326 = vrsqrt.pop %v1318
        %v1327 = vrsqrt.pop %v1319
        %v1328 = vrsqrt.pop %v1320
        %v1329 = vrsqrt.pop %v1321
        %v1330 = vrsqrt.pop %v1322
        %v1331 = vrsqrt.pop %v1323
        %v1332 = vrsqrt.pop %v1324
        %v1333 = vmul.f32 %v1245, %v1325
        %v1334 = vmul.f32 %v1246, %v1326
        %v1335 = vmul.f32 %v1247, %v1327
        %v1336 = vmul.f32 %v1248, %v1328
        %v1337 = vmul.f32 %v1249, %v1329
        %v1338 = vmul.f32 %v1250, %v1330
        %v1339 = vmul.f32 %v1251, %v1331
        %v1340 = vmul.f32 %v1252, %v1332
        %v1341 = vld [vmem:[%s11] sm:$0x1]
        %v1343 = vlaneseq
        %v1344 = vshrl.u32 %v1343, 7
        %v1345 = vsub.s32 0, %v1344
        %v1346 = vrot.slane %v1341, %v1345
        %v1348 = vmul.f32 %v1333, %v1346
        %v1349 = vmul.f32 %v1334, %v1346
        %v1350 = vmul.f32 %v1335, %v1346
        %v1351 = vmul.f32 %v1336, %v1346
        %v1352 = vmul.f32 %v1337, %v1346
        %v1353 = vmul.f32 %v1338, %v1346
        %v1354 = vmul.f32 %v1339, %v1346
        %v1355 = vmul.f32 %v1340, %v1346
        %v1356 = vld [vmem:[%s12] sm:$0x1]
        %v1358 = vlaneseq
        %v1359 = vshrl.u32 %v1358, 7
        %v1360 = vsub.s32 0, %v1359
        %v1361 = vrot.slane %v1356, %v1360
        %v1363 = vadd.f32 %v1348, %v1361
        %v1364 = vadd.f32 %v1349, %v1361
        %v1365 = vadd.f32 %v1350, %v1361
        %v1366 = vadd.f32 %v1351, %v1361
        %v1367 = vadd.f32 %v1352, %v1361
        %v1368 = vadd.f32 %v1353, %v1361
        %v1369 = vadd.f32 %v1354, %v1361
        %v1370 = vadd.f32 %v1355, %v1361
        %1371 = vst [vmem:[%s502] sm:$0xff] %v1363
        %1372 = vst [vmem:[%s502 + $0x8] sm:$0xff] %v1364
        %1373 = vst [vmem:[%s502 + $0x10] sm:$0xff] %v1365
        %1374 = vst [vmem:[%s502 + $0x18] sm:$0xff] %v1366
        %1375 = vst [vmem:[%s502 + $0x20] sm:$0xff] %v1367
        %1376 = vst [vmem:[%s502 + $0x28] sm:$0xff] %v1368
        %1377 = vst [vmem:[%s502 + $0x30] sm:$0xff] %v1369
        %1378 = vst [vmem:[%s502 + $0x38] sm:$0xff] %v1370
        %s1379 = sand.u32 %s318, 1
        %s1380 = scalar_lea.sflag [#allocation4], %s1379
        %s1381 = sand.u32 %s318, 1
        %s1382 = smul.addr %s1381, 64
        %s1383 = scalar_lea.vmem [#allocation10], %s1382
        // Predicated region
        $region89: #{tpu_custom_call.1} parent=71 // pred_check
          %p1384 = pneg %p328
        $region90: #{tpu_custom_call.1} parent=71 // pred_check_branch
          %1386 = sbr.rel (%p1384) target = $region92
        $region91: #{tpu_custom_call.1} parent=71 // pred_region
          %s1387 = smul.u32 8, %s32
          %s1389 = ssub.s32 1024, 1024
          %1390 = vsyncadd %s1380, %s1389
          %s1391 = smul.addr %s1387, 128
          %s1392 = scalar_lea.hbm %s13, %s1391
          %s1393 = sshll.u32 %s1383, 4
          %s1394 = int_to_ptr.vmem [resolvable:$true] %s1393
          %1399 = dma.vmem_to_hbm [thread:$0]  %s1394, 1024, %s1392, %s1380, 128, 128, 8
        $region92: #{tpu_custom_call.1} parent=71 // pred_fallthru
          _
      $region72: #{tpu_custom_call.1} parent=5 // pred_fallthru
        _
      %p1400 = scmp.le.s32.totalorder 2, %s27
      // Predicated region
      $region93: #{tpu_custom_call.1} parent=5 // pred_check
        %p1401 = pneg %p1400
      $region94: #{tpu_custom_call.1} parent=5 // pred_check_branch
        %1403 = sbr.rel (%p1401) target = $region96
      $region95: #{tpu_custom_call.1} parent=5 // pred_region
        %s1404 = ssub.s32 %s27, 2
        // Predicated region
        $region97: #{tpu_custom_call.1} parent=95 // pred_check
          %p1405 = pneg %p334
        $region98: #{tpu_custom_call.1} parent=95 // pred_check_branch
          %1407 = sbr.rel (%p1405) target = $region100
        $region99: #{tpu_custom_call.1} parent=95 // pred_region
          %s1408 = sand.u32 %s319, 1
          %s1409 = scalar_lea.sflag [#allocation4], %s1408
          %s1410 = sand.u32 %s319, 1
          %s1411 = smul.addr %s1410, 64
          %s1412 = scalar_lea.vmem [#allocation10], %s1411
          %1413 = dma.done %s1409, 1024
        $region100: #{tpu_custom_call.1} parent=95 // pred_fallthru
          _
      $region96: #{tpu_custom_call.1} parent=5 // pred_fallthru
        _
    $region6: #{tpu_custom_call.1} parent=1 // loop_footer
      %s31 = sadd.s32 1, %s27
    $region7: #{tpu_custom_call.1} parent=1 // loop_footer_branch
      %26 = sbr.rel target = $region3
    $region8: #{tpu_custom_call.1} parent=1 // loop_exit
      _
    %1414 = vsyncpa [#allocation3], 1
    %s1415 = scalar_lea.sflag [#allocation3], 1
    %1416 = vsyncpa %s1415, 1
    %1417 = vsyncpa [#allocation6], 1
    %1418 = vsyncpa [#allocation9], 1
    %1419 = vsyncpa [#allocation4], 1
    %s1420 = scalar_lea.sflag [#allocation4], 1
    %1421 = vsyncpa %s1420, 1

</llo_original>
